<compile_context>
chip_gen: v7x
topology: tpu7x:2x2x1
jax: 0.10.0
libtpu: 0.0.40
codegen_flags: <defaults>
</compile_context>

<pallas_src>
import jax
import jax.numpy as jnp
from jax.experimental import pallas as pl
from jax.experimental.pallas import tpu as pltpu


def rnn_kernel(xb_ref, h0_ref, gru_ref, lin_ref, out_ref, hs_ref):
    T, twoI = xb_ref.shape
    twoH = h0_ref.shape[1]
    H = twoH // 2
    fourH = 2 * twoH
    r_hh = -(-twoI // 8) * 8                 # 8-row-aligned offset of W_hh in the slab

    # Static slices of the packed GRU slab (zero-cost ref views).
    wih = gru_ref[0:twoI, :]                               # (2I, 6H)
    whh = gru_ref[r_hh:r_hh + twoH, :]                     # (2H, 6H)  block-sparse
    gi_bias = gru_ref[r_hh + twoH:r_hh + twoH + 1, :]      # (1, 6H)   b_ih (+ b_hh for r,z)
    ghn_bias = gru_ref[r_hh + twoH + 1:r_hh + twoH + 2, :]  # (1, 6H)  b_hh_n in n slots only

    # Hoisted input projection: both directions, all gates, one MXU push.
    # Row s of gi holds [r_f, r_b, z_f, z_b, n_f, n_b] pre-activations for
    # fwd time s and bwd time T-1-s (x_both already carries the flipped x).
    gi = jnp.dot(xb_ref[...], wih, preferred_element_type=jnp.float32) + gi_bias  # (T, 6H)

    h = h0_ref[...]                                        # (1, 2H) = [h_f | h_b]
    for s in range(T):                                     # statically unrolled (T small)
        # One MXU round-trip per step on the serial chain (was 6).
        gh = jnp.dot(h, whh, preferred_element_type=jnp.float32) + ghn_bias       # (1, 6H)
        a = gi[s:s + 1, :]
        # sigmoid(x) = 0.5*(1 + tanh(0.5*x)): single EUP push for both r and z (4H lanes).
        rz = 0.5 * (1.0 + jnp.tanh(0.5 * (a[:, :fourH] + gh[:, :fourH])))          # (1, 4H)
        r = rz[:, :twoH]
        z = rz[:, twoH:]
        n = jnp.tanh(a[:, fourH:] + r * gh[:, fourH:])                             # (1, 2H)
        h = n + z * (h - n)                                # == (1-z)*n + z*h
        # Writeback (store slot, off the dependency chain): fwd half -> row s,
        # bwd half -> row T-1-s, so hs ends up time-ordered with [h_fwd | h_bwd].
        hs_ref[s:s + 1, 0:H] = h[:, 0:H]
        hs_ref[T - 1 - s:T - s, H:twoH] = h[:, H:twoH]

    # Linear on concat([h_fwd, h_bwd], -1): one (T,2H)x(2H,O) dot with W_lin.T.
    wl = lin_ref[0:twoH, :]
    bl = lin_ref[twoH:twoH + 1, :]
    logits = jnp.dot(hs_ref[...], wl, preferred_element_type=jnp.float32) + bl     # (T, O)

    # LogSoftmax over the class dim (PyTorch dim=2).
    m = jnp.max(logits, axis=-1, keepdims=True)
    lse = m + jnp.log(jnp.sum(jnp.exp(logits - m), axis=-1, keepdims=True))
    out_ref[...] = logits - lse


def _pack_inputs(x, h0, params):
    """Host-side packing into 4 slabs: x_both, h0_packed, GRU slab, Linear slab."""
    T, B, I = x.shape
    H = h0.shape[2]
    O = params["b_lin"].shape[-1]
    twoI, twoH = 2 * I, 2 * H

    x2 = x.reshape(T, I)
    x_both = jnp.concatenate([x2, x2[::-1]], axis=1)        # (T, 2I): [x_t | x_{T-1-t}]
    h0_packed = jnp.concatenate([h0[0], h0[1]], axis=1)     # (1, 2H): [h0_f | h0_b]

    # GRU slab rows: [0:2I) W_ih | [r_hh:r_hh+2H) W_hh | gi-bias row | gh-n-bias row.
    # Columns are gate-major / direction-minor: [r_f r_b | z_f z_b | n_f n_b], H each.
    r_hh = -(-twoI // 8) * 8
    slab = jnp.zeros((r_hh + twoH + 2, 6 * H), jnp.float32)

    def gate(w, g):                                         # gate g of a (3H, ...) tensor
        return w[g * H:(g + 1) * H]

    for name, d in (("f", 0), ("b", 1)):
        wih, whh = params[f"w_ih_{name}"], params[f"w_hh_{name}"]
        bih, bhh = params[f"b_ih_{name}"], params[f"b_hh_{name}"]
        for g in range(3):                                  # 0:r 1:z 2:n
            c = g * twoH + d * H
            # pre-transposed so the kernel never transposes: x@W_i*.T, h@W_h*.T
            slab = slab.at[d * I:(d + 1) * I, c:c + H].set(gate(wih, g).T)
            slab = slab.at[r_hh + d * H:r_hh + (d + 1) * H, c:c + H].set(gate(whh, g).T)
        brow = r_hh + twoH
        # r,z: fold b_hh into b_ih (same pre-activation); n: b_ih only here.
        slab = slab.at[brow, 0 * twoH + d * H:0 * twoH + (d + 1) * H].set(
            gate(bih, 0) + gate(bhh, 0))
        slab = slab.at[brow, 1 * twoH + d * H:1 * twoH + (d + 1) * H].set(
            gate(bih, 1) + gate(bhh, 1))
        slab = slab.at[brow, 2 * twoH + d * H:2 * twoH + (d + 1) * H].set(gate(bih, 2))
        # b_hh_n must stay inside r*(.), so it lives in the per-step gh bias row.
        slab = slab.at[brow + 1, 2 * twoH + d * H:2 * twoH + (d + 1) * H].set(gate(bhh, 2))

    # Linear slab: rows [0:2H) = W_lin.T, row 2H = bias.
    lin = jnp.concatenate([params["w_lin"].T, params["b_lin"].reshape(1, O)], axis=0)
    return x_both, h0_packed, slab, lin


def rnn_forward(x, h0, params):
    T, B, I = x.shape
    H = h0.shape[2]
    O = params["b_lin"].shape[-1]
    assert B == 1, "module forces batch=1 via initHidden()"

    inputs = _pack_inputs(x, h0, params)
    vmem = pl.BlockSpec(memory_space=pltpu.MemorySpace.VMEM)
    out2d = pl.pallas_call(
        rnn_kernel,
        out_shape=jax.ShapeDtypeStruct((T, O), jnp.float32),
        in_specs=[vmem] * len(inputs),
        out_specs=vmem,
        scratch_shapes=[pltpu.VMEM((T, 2 * H), jnp.float32)],
    )(*inputs)
    return out2d.reshape(T, B, O)


def init_params(key, input_size, hidden_size, output_size):
    H = hidden_size
    kg = 1.0 / (H ** 0.5)                 # PyTorch GRU init bound
    kl = 1.0 / ((2 * H) ** 0.5)           # PyTorch Linear init bound (in_features = 2H)
    keys = jax.random.split(key, 10)

    def u(k_, shape, bound):
        return jax.random.uniform(k_, shape, jnp.float32, -bound, bound)

    return {
        "w_ih_f": u(keys[0], (3 * H, input_size), kg),
        "w_hh_f": u(keys[1], (3 * H, H), kg),
        "b_ih_f": u(keys[2], (3 * H,), kg),
        "b_hh_f": u(keys[3], (3 * H,), kg),
        "w_ih_b": u(keys[4], (3 * H, input_size), kg),
        "w_hh_b": u(keys[5], (3 * H, H), kg),
        "b_ih_b": u(keys[6], (3 * H,), kg),
        "b_hh_b": u(keys[7], (3 * H,), kg),
        "w_lin":  u(keys[8], (output_size, 2 * H), kl),
        "b_lin":  u(keys[9], (output_size,), kl),
    }


def rnn_reference(x, h0, params):
    """Pure-JAX reference with PyTorch-identical math (for correctness check)."""
    T, B, _ = x.shape
    H = h0.shape[2]
    hp = jax.lax.Precision.HIGHEST

    def cell(xt, h, w_ih, w_hh, b_ih, b_hh):
        gi = jnp.dot(xt, w_ih.T, precision=hp) + b_ih
        gh = jnp.dot(h, w_hh.T, precision=hp) + b_hh
        r = jax.nn.sigmoid(gi[:, :H] + gh[:, :H])
        z = jax.nn.sigmoid(gi[:, H:2 * H] + gh[:, H:2 * H])
        n = jnp.tanh(gi[:, 2 * H:] + r * gh[:, 2 * H:])
        return (1.0 - z) * n + z * h

    h_f, h_b = h0[0], h0[1]
    outs_f, outs_b = [], [None] * T
    for t in range(T):
        h_f = cell(x[t], h_f, params["w_ih_f"], params["w_hh_f"],
                   params["b_ih_f"][None], params["b_hh_f"][None])
        outs_f.append(h_f)
    for t in range(T - 1, -1, -1):
        h_b = cell(x[t], h_b, params["w_ih_b"], params["w_hh_b"],
                   params["b_ih_b"][None], params["b_hh_b"][None])
        outs_b[t] = h_b
    out = jnp.concatenate([jnp.stack(outs_f), jnp.stack(outs_b)], axis=-1)  # (T,B,2H)
    logits = jnp.einsum("tbh,oh->tbo", out, params["w_lin"], precision=hp) + params["b_lin"]
    return logits - jax.nn.logsumexp(logits, axis=-1, keepdims=True)


if __name__ == "__main__":
    # Small shapes consistent with the module: input_size=n_pixels=20, seq=8,
    # batch=1 (forced by initHidden), hidden=32, output(n_letters)=16.
    T, B, I, H, O = 8, 1, 20, 32, 16

    key = jax.random.PRNGKey(0)
    k_x, k_p = jax.random.split(key)
    x = jax.random.normal(k_x, (T, B, I), jnp.float32)
    h0 = jnp.zeros((2, B, H), jnp.float32)   # rnn.initHidden()
    params = init_params(k_p, I, H, O)

    out = rnn_forward(x, h0, params)
    out = jax.block_until_ready(out)

    ref = jax.block_until_ready(rnn_reference(x, h0, params))
    assert out.shape == (T, B, O)
    assert bool(jnp.all(jnp.isfinite(out)))
    assert bool(jnp.allclose(out, ref, atol=1e-3, rtol=1e-3)), "mismatch vs JAX reference"

    print("KERNEL_OK")
</pallas_src>

<mosaic_0001>
module attributes {stable_mosaic.version = 11 : i64} {
  func.func @rnn_kernel(%arg0: memref<8x40xf32, #tpu.memory_space<vmem>>, %arg1: memref<1x64xf32, #tpu.memory_space<vmem>>, %arg2: memref<106x192xf32, #tpu.memory_space<vmem>>, %arg3: memref<65x16xf32, #tpu.memory_space<vmem>>, %arg4: memref<8x16xf32, #tpu.memory_space<vmem>>, %arg5: memref<8x64xf32, #tpu.memory_space<vmem>>) attributes {dimension_semantics = [], scalar_prefetch = 0 : i64, scratch_operands = 1 : i64, tpu.core_type = #tpu.core_type<tc>} {
    %c0 = arith.constant 0 : index
    %c0_0 = arith.constant 0 : index
    %0 = vector.load %arg2[%c0, %c0_0] : memref<106x192xf32, #tpu.memory_space<vmem>>, vector<40x192xf32>
    %c40 = arith.constant 40 : index
    %c0_1 = arith.constant 0 : index
    %1 = vector.load %arg2[%c40, %c0_1] : memref<106x192xf32, #tpu.memory_space<vmem>>, vector<64x192xf32>
    %c104 = arith.constant 104 : index
    %c0_2 = arith.constant 0 : index
    %2 = vector.load %arg2[%c104, %c0_2] : memref<106x192xf32, #tpu.memory_space<vmem>>, vector<1x192xf32>
    %c105 = arith.constant 105 : index
    %c0_3 = arith.constant 0 : index
    %3 = vector.load %arg2[%c105, %c0_3] : memref<106x192xf32, #tpu.memory_space<vmem>>, vector<1x192xf32>
    %c0_4 = arith.constant 0 : index
    %c0_5 = arith.constant 0 : index
    %4 = vector.load %arg0[%c0_4, %c0_5] : memref<8x40xf32, #tpu.memory_space<vmem>>, vector<8x40xf32>
    %cst = arith.constant dense<0.000000e+00> : vector<8x192xf32>
    %5 = tpu.matmul %4, %0, %cst {dimension_numbers = #tpu.dot_dimension_numbers<[1], [0], [0], [1], [0, 0, 1, 1], [], []>} : vector<8x40xf32>, vector<40x192xf32>, vector<8x192xf32> -> vector<8x192xf32>
    %6 = vector.broadcast %2 : vector<1x192xf32> to vector<8x192xf32>
    %7 = arith.addf %5, %6 : vector<8x192xf32>
    %c0_6 = arith.constant 0 : index
    %c0_7 = arith.constant 0 : index
    %8 = vector.load %arg1[%c0_6, %c0_7] : memref<1x64xf32, #tpu.memory_space<vmem>>, vector<1x64xf32>
    %cst_8 = arith.constant dense<0.000000e+00> : vector<1x192xf32>
    %9 = tpu.matmul %8, %1, %cst_8 {dimension_numbers = #tpu.dot_dimension_numbers<[1], [0], [0], [1], [0, 0, 1, 1], [], []>} : vector<1x64xf32>, vector<64x192xf32>, vector<1x192xf32> -> vector<1x192xf32>
    %10 = arith.addf %9, %3 : vector<1x192xf32>
    %11 = vector.extract_strided_slice %7 {offsets = [0, 0], sizes = [1, 192], strides = [1, 1]} : vector<8x192xf32> to vector<1x192xf32>
    %12 = vector.extract_strided_slice %11 {offsets = [0, 0], sizes = [1, 128], strides = [1, 1]} : vector<1x192xf32> to vector<1x128xf32>
    %13 = vector.extract_strided_slice %10 {offsets = [0, 0], sizes = [1, 128], strides = [1, 1]} : vector<1x192xf32> to vector<1x128xf32>
    %14 = arith.addf %12, %13 : vector<1x128xf32>
    %cst_9 = arith.constant 5.000000e-01 : f32
    %15 = vector.broadcast %cst_9 : f32 to vector<1x128xf32>
    %16 = arith.mulf %15, %14 : vector<1x128xf32>
    %17 = math.tanh %16 : vector<1x128xf32>
    %cst_10 = arith.constant 1.000000e+00 : f32
    %18 = vector.broadcast %cst_10 : f32 to vector<1x128xf32>
    %19 = arith.addf %18, %17 : vector<1x128xf32>
    %cst_11 = arith.constant 5.000000e-01 : f32
    %20 = vector.broadcast %cst_11 : f32 to vector<1x128xf32>
    %21 = arith.mulf %20, %19 : vector<1x128xf32>
    %22 = vector.extract_strided_slice %21 {offsets = [0, 0], sizes = [1, 64], strides = [1, 1]} : vector<1x128xf32> to vector<1x64xf32>
    %23 = vector.extract_strided_slice %21 {offsets = [0, 64], sizes = [1, 64], strides = [1, 1]} : vector<1x128xf32> to vector<1x64xf32>
    %24 = vector.extract_strided_slice %11 {offsets = [0, 128], sizes = [1, 64], strides = [1, 1]} : vector<1x192xf32> to vector<1x64xf32>
    %25 = vector.extract_strided_slice %10 {offsets = [0, 128], sizes = [1, 64], strides = [1, 1]} : vector<1x192xf32> to vector<1x64xf32>
    %26 = arith.mulf %22, %25 : vector<1x64xf32>
    %27 = arith.addf %24, %26 : vector<1x64xf32>
    %28 = math.tanh %27 : vector<1x64xf32>
    %29 = arith.subf %8, %28 : vector<1x64xf32>
    %30 = arith.mulf %23, %29 : vector<1x64xf32>
    %31 = arith.addf %28, %30 : vector<1x64xf32>
    %32 = vector.extract_strided_slice %31 {offsets = [0, 0], sizes = [1, 32], strides = [1, 1]} : vector<1x64xf32> to vector<1x32xf32>
    %c0_12 = arith.constant 0 : index
    %c0_13 = arith.constant 0 : index
    %33 = vector.load %arg5[%c0_12, %c0_13] : memref<8x64xf32, #tpu.memory_space<vmem>>, vector<1x32xf32>
    tpu.vector_store %arg5[%c0_12, %c0_13], %32 {strides = array<i32>} : memref<8x64xf32, #tpu.memory_space<vmem>>, vector<1x32xf32>,
    %34 = vector.extract_strided_slice %31 {offsets = [0, 32], sizes = [1, 32], strides = [1, 1]} : vector<1x64xf32> to vector<1x32xf32>
    %c7 = arith.constant 7 : index
    %c32 = arith.constant 32 : index
    %35 = vector.load %arg5[%c7, %c32] : memref<8x64xf32, #tpu.memory_space<vmem>>, vector<1x32xf32>
    tpu.vector_store %arg5[%c7, %c32], %34 {strides = array<i32>} : memref<8x64xf32, #tpu.memory_space<vmem>>, vector<1x32xf32>,
    %cst_14 = arith.constant dense<0.000000e+00> : vector<1x192xf32>
    %36 = tpu.matmul %31, %1, %cst_14 {dimension_numbers = #tpu.dot_dimension_numbers<[1], [0], [0], [1], [0, 0, 1, 1], [], []>} : vector<1x64xf32>, vector<64x192xf32>, vector<1x192xf32> -> vector<1x192xf32>
    %37 = arith.addf %36, %3 : vector<1x192xf32>
    %38 = vector.extract_strided_slice %7 {offsets = [1, 0], sizes = [1, 192], strides = [1, 1]} : vector<8x192xf32> to vector<1x192xf32>
    %39 = vector.extract_strided_slice %38 {offsets = [0, 0], sizes = [1, 128], strides = [1, 1]} : vector<1x192xf32> to vector<1x128xf32>
    %40 = vector.extract_strided_slice %37 {offsets = [0, 0], sizes = [1, 128], strides = [1, 1]} : vector<1x192xf32> to vector<1x128xf32>
    %41 = arith.addf %39, %40 : vector<1x128xf32>
    %cst_15 = arith.constant 5.000000e-01 : f32
    %42 = vector.broadcast %cst_15 : f32 to vector<1x128xf32>
    %43 = arith.mulf %42, %41 : vector<1x128xf32>
    %44 = math.tanh %43 : vector<1x128xf32>
    %cst_16 = arith.constant 1.000000e+00 : f32
    %45 = vector.broadcast %cst_16 : f32 to vector<1x128xf32>
    %46 = arith.addf %45, %44 : vector<1x128xf32>
    %cst_17 = arith.constant 5.000000e-01 : f32
    %47 = vector.broadcast %cst_17 : f32 to vector<1x128xf32>
    %48 = arith.mulf %47, %46 : vector<1x128xf32>
    %49 = vector.extract_strided_slice %48 {offsets = [0, 0], sizes = [1, 64], strides = [1, 1]} : vector<1x128xf32> to vector<1x64xf32>
    %50 = vector.extract_strided_slice %48 {offsets = [0, 64], sizes = [1, 64], strides = [1, 1]} : vector<1x128xf32> to vector<1x64xf32>
    %51 = vector.extract_strided_slice %38 {offsets = [0, 128], sizes = [1, 64], strides = [1, 1]} : vector<1x192xf32> to vector<1x64xf32>
    %52 = vector.extract_strided_slice %37 {offsets = [0, 128], sizes = [1, 64], strides = [1, 1]} : vector<1x192xf32> to vector<1x64xf32>
    %53 = arith.mulf %49, %52 : vector<1x64xf32>
    %54 = arith.addf %51, %53 : vector<1x64xf32>
    %55 = math.tanh %54 : vector<1x64xf32>
    %56 = arith.subf %31, %55 : vector<1x64xf32>
    %57 = arith.mulf %50, %56 : vector<1x64xf32>
    %58 = arith.addf %55, %57 : vector<1x64xf32>
    %59 = vector.extract_strided_slice %58 {offsets = [0, 0], sizes = [1, 32], strides = [1, 1]} : vector<1x64xf32> to vector<1x32xf32>
    %c1 = arith.constant 1 : index
    %c0_18 = arith.constant 0 : index
    %60 = vector.load %arg5[%c1, %c0_18] : memref<8x64xf32, #tpu.memory_space<vmem>>, vector<1x32xf32>
    tpu.vector_store %arg5[%c1, %c0_18], %59 {strides = array<i32>} : memref<8x64xf32, #tpu.memory_space<vmem>>, vector<1x32xf32>,
    %61 = vector.extract_strided_slice %58 {offsets = [0, 32], sizes = [1, 32], strides = [1, 1]} : vector<1x64xf32> to vector<1x32xf32>
    %c6 = arith.constant 6 : index
    %c32_19 = arith.constant 32 : index
    %62 = vector.load %arg5[%c6, %c32_19] : memref<8x64xf32, #tpu.memory_space<vmem>>, vector<1x32xf32>
    tpu.vector_store %arg5[%c6, %c32_19], %61 {strides = array<i32>} : memref<8x64xf32, #tpu.memory_space<vmem>>, vector<1x32xf32>,
    %cst_20 = arith.constant dense<0.000000e+00> : vector<1x192xf32>
    %63 = tpu.matmul %58, %1, %cst_20 {dimension_numbers = #tpu.dot_dimension_numbers<[1], [0], [0], [1], [0, 0, 1, 1], [], []>} : vector<1x64xf32>, vector<64x192xf32>, vector<1x192xf32> -> vector<1x192xf32>
    %64 = arith.addf %63, %3 : vector<1x192xf32>
    %65 = vector.extract_strided_slice %7 {offsets = [2, 0], sizes = [1, 192], strides = [1, 1]} : vector<8x192xf32> to vector<1x192xf32>
    %66 = vector.extract_strided_slice %65 {offsets = [0, 0], sizes = [1, 128], strides = [1, 1]} : vector<1x192xf32> to vector<1x128xf32>
    %67 = vector.extract_strided_slice %64 {offsets = [0, 0], sizes = [1, 128], strides = [1, 1]} : vector<1x192xf32> to vector<1x128xf32>
    %68 = arith.addf %66, %67 : vector<1x128xf32>
    %cst_21 = arith.constant 5.000000e-01 : f32
    %69 = vector.broadcast %cst_21 : f32 to vector<1x128xf32>
    %70 = arith.mulf %69, %68 : vector<1x128xf32>
    %71 = math.tanh %70 : vector<1x128xf32>
    %cst_22 = arith.constant 1.000000e+00 : f32
    %72 = vector.broadcast %cst_22 : f32 to vector<1x128xf32>
    %73 = arith.addf %72, %71 : vector<1x128xf32>
    %cst_23 = arith.constant 5.000000e-01 : f32
    %74 = vector.broadcast %cst_23 : f32 to vector<1x128xf32>
    %75 = arith.mulf %74, %73 : vector<1x128xf32>
    %76 = vector.extract_strided_slice %75 {offsets = [0, 0], sizes = [1, 64], strides = [1, 1]} : vector<1x128xf32> to vector<1x64xf32>
    %77 = vector.extract_strided_slice %75 {offsets = [0, 64], sizes = [1, 64], strides = [1, 1]} : vector<1x128xf32> to vector<1x64xf32>
    %78 = vector.extract_strided_slice %65 {offsets = [0, 128], sizes = [1, 64], strides = [1, 1]} : vector<1x192xf32> to vector<1x64xf32>
    %79 = vector.extract_strided_slice %64 {offsets = [0, 128], sizes = [1, 64], strides = [1, 1]} : vector<1x192xf32> to vector<1x64xf32>
    %80 = arith.mulf %76, %79 : vector<1x64xf32>
    %81 = arith.addf %78, %80 : vector<1x64xf32>
    %82 = math.tanh %81 : vector<1x64xf32>
    %83 = arith.subf %58, %82 : vector<1x64xf32>
    %84 = arith.mulf %77, %83 : vector<1x64xf32>
    %85 = arith.addf %82, %84 : vector<1x64xf32>
    %86 = vector.extract_strided_slice %85 {offsets = [0, 0], sizes = [1, 32], strides = [1, 1]} : vector<1x64xf32> to vector<1x32xf32>
    %c2 = arith.constant 2 : index
    %c0_24 = arith.constant 0 : index
    %87 = vector.load %arg5[%c2, %c0_24] : memref<8x64xf32, #tpu.memory_space<vmem>>, vector<1x32xf32>
    tpu.vector_store %arg5[%c2, %c0_24], %86 {strides = array<i32>} : memref<8x64xf32, #tpu.memory_space<vmem>>, vector<1x32xf32>,
    %88 = vector.extract_strided_slice %85 {offsets = [0, 32], sizes = [1, 32], strides = [1, 1]} : vector<1x64xf32> to vector<1x32xf32>
    %c5 = arith.constant 5 : index
    %c32_25 = arith.constant 32 : index
    %89 = vector.load %arg5[%c5, %c32_25] : memref<8x64xf32, #tpu.memory_space<vmem>>, vector<1x32xf32>
    tpu.vector_store %arg5[%c5, %c32_25], %88 {strides = array<i32>} : memref<8x64xf32, #tpu.memory_space<vmem>>, vector<1x32xf32>,
    %cst_26 = arith.constant dense<0.000000e+00> : vector<1x192xf32>
    %90 = tpu.matmul %85, %1, %cst_26 {dimension_numbers = #tpu.dot_dimension_numbers<[1], [0], [0], [1], [0, 0, 1, 1], [], []>} : vector<1x64xf32>, vector<64x192xf32>, vector<1x192xf32> -> vector<1x192xf32>
    %91 = arith.addf %90, %3 : vector<1x192xf32>
    %92 = vector.extract_strided_slice %7 {offsets = [3, 0], sizes = [1, 192], strides = [1, 1]} : vector<8x192xf32> to vector<1x192xf32>
    %93 = vector.extract_strided_slice %92 {offsets = [0, 0], sizes = [1, 128], strides = [1, 1]} : vector<1x192xf32> to vector<1x128xf32>
    %94 = vector.extract_strided_slice %91 {offsets = [0, 0], sizes = [1, 128], strides = [1, 1]} : vector<1x192xf32> to vector<1x128xf32>
    %95 = arith.addf %93, %94 : vector<1x128xf32>
    %cst_27 = arith.constant 5.000000e-01 : f32
    %96 = vector.broadcast %cst_27 : f32 to vector<1x128xf32>
    %97 = arith.mulf %96, %95 : vector<1x128xf32>
    %98 = math.tanh %97 : vector<1x128xf32>
    %cst_28 = arith.constant 1.000000e+00 : f32
    %99 = vector.broadcast %cst_28 : f32 to vector<1x128xf32>
    %100 = arith.addf %99, %98 : vector<1x128xf32>
    %cst_29 = arith.constant 5.000000e-01 : f32
    %101 = vector.broadcast %cst_29 : f32 to vector<1x128xf32>
    %102 = arith.mulf %101, %100 : vector<1x128xf32>
    %103 = vector.extract_strided_slice %102 {offsets = [0, 0], sizes = [1, 64], strides = [1, 1]} : vector<1x128xf32> to vector<1x64xf32>
    %104 = vector.extract_strided_slice %102 {offsets = [0, 64], sizes = [1, 64], strides = [1, 1]} : vector<1x128xf32> to vector<1x64xf32>
    %105 = vector.extract_strided_slice %92 {offsets = [0, 128], sizes = [1, 64], strides = [1, 1]} : vector<1x192xf32> to vector<1x64xf32>
    %106 = vector.extract_strided_slice %91 {offsets = [0, 128], sizes = [1, 64], strides = [1, 1]} : vector<1x192xf32> to vector<1x64xf32>
    %107 = arith.mulf %103, %106 : vector<1x64xf32>
    %108 = arith.addf %105, %107 : vector<1x64xf32>
    %109 = math.tanh %108 : vector<1x64xf32>
    %110 = arith.subf %85, %109 : vector<1x64xf32>
    %111 = arith.mulf %104, %110 : vector<1x64xf32>
    %112 = arith.addf %109, %111 : vector<1x64xf32>
    %113 = vector.extract_strided_slice %112 {offsets = [0, 0], sizes = [1, 32], strides = [1, 1]} : vector<1x64xf32> to vector<1x32xf32>
    %c3 = arith.constant 3 : index
    %c0_30 = arith.constant 0 : index
    %114 = vector.load %arg5[%c3, %c0_30] : memref<8x64xf32, #tpu.memory_space<vmem>>, vector<1x32xf32>
    tpu.vector_store %arg5[%c3, %c0_30], %113 {strides = array<i32>} : memref<8x64xf32, #tpu.memory_space<vmem>>, vector<1x32xf32>,
    %115 = vector.extract_strided_slice %112 {offsets = [0, 32], sizes = [1, 32], strides = [1, 1]} : vector<1x64xf32> to vector<1x32xf32>
    %c4 = arith.constant 4 : index
    %c32_31 = arith.constant 32 : index
    %116 = vector.load %arg5[%c4, %c32_31] : memref<8x64xf32, #tpu.memory_space<vmem>>, vector<1x32xf32>
    tpu.vector_store %arg5[%c4, %c32_31], %115 {strides = array<i32>} : memref<8x64xf32, #tpu.memory_space<vmem>>, vector<1x32xf32>,
    %cst_32 = arith.constant dense<0.000000e+00> : vector<1x192xf32>
    %117 = tpu.matmul %112, %1, %cst_32 {dimension_numbers = #tpu.dot_dimension_numbers<[1], [0], [0], [1], [0, 0, 1, 1], [], []>} : vector<1x64xf32>, vector<64x192xf32>, vector<1x192xf32> -> vector<1x192xf32>
    %118 = arith.addf %117, %3 : vector<1x192xf32>
    %119 = vector.extract_strided_slice %7 {offsets = [4, 0], sizes = [1, 192], strides = [1, 1]} : vector<8x192xf32> to vector<1x192xf32>
    %120 = vector.extract_strided_slice %119 {offsets = [0, 0], sizes = [1, 128], strides = [1, 1]} : vector<1x192xf32> to vector<1x128xf32>
    %121 = vector.extract_strided_slice %118 {offsets = [0, 0], sizes = [1, 128], strides = [1, 1]} : vector<1x192xf32> to vector<1x128xf32>
    %122 = arith.addf %120, %121 : vector<1x128xf32>
    %cst_33 = arith.constant 5.000000e-01 : f32
    %123 = vector.broadcast %cst_33 : f32 to vector<1x128xf32>
    %124 = arith.mulf %123, %122 : vector<1x128xf32>
    %125 = math.tanh %124 : vector<1x128xf32>
    %cst_34 = arith.constant 1.000000e+00 : f32
    %126 = vector.broadcast %cst_34 : f32 to vector<1x128xf32>
    %127 = arith.addf %126, %125 : vector<1x128xf32>
    %cst_35 = arith.constant 5.000000e-01 : f32
    %128 = vector.broadcast %cst_35 : f32 to vector<1x128xf32>
    %129 = arith.mulf %128, %127 : vector<1x128xf32>
    %130 = vector.extract_strided_slice %129 {offsets = [0, 0], sizes = [1, 64], strides = [1, 1]} : vector<1x128xf32> to vector<1x64xf32>
    %131 = vector.extract_strided_slice %129 {offsets = [0, 64], sizes = [1, 64], strides = [1, 1]} : vector<1x128xf32> to vector<1x64xf32>
    %132 = vector.extract_strided_slice %119 {offsets = [0, 128], sizes = [1, 64], strides = [1, 1]} : vector<1x192xf32> to vector<1x64xf32>
    %133 = vector.extract_strided_slice %118 {offsets = [0, 128], sizes = [1, 64], strides = [1, 1]} : vector<1x192xf32> to vector<1x64xf32>
    %134 = arith.mulf %130, %133 : vector<1x64xf32>
    %135 = arith.addf %132, %134 : vector<1x64xf32>
    %136 = math.tanh %135 : vector<1x64xf32>
    %137 = arith.subf %112, %136 : vector<1x64xf32>
    %138 = arith.mulf %131, %137 : vector<1x64xf32>
    %139 = arith.addf %136, %138 : vector<1x64xf32>
    %140 = vector.extract_strided_slice %139 {offsets = [0, 0], sizes = [1, 32], strides = [1, 1]} : vector<1x64xf32> to vector<1x32xf32>
    %c4_36 = arith.constant 4 : index
    %c0_37 = arith.constant 0 : index
    %141 = vector.load %arg5[%c4_36, %c0_37] : memref<8x64xf32, #tpu.memory_space<vmem>>, vector<1x32xf32>
    tpu.vector_store %arg5[%c4_36, %c0_37], %140 {strides = array<i32>} : memref<8x64xf32, #tpu.memory_space<vmem>>, vector<1x32xf32>,
    %142 = vector.extract_strided_slice %139 {offsets = [0, 32], sizes = [1, 32], strides = [1, 1]} : vector<1x64xf32> to vector<1x32xf32>
    %c3_38 = arith.constant 3 : index
    %c32_39 = arith.constant 32 : index
    %143 = vector.load %arg5[%c3_38, %c32_39] : memref<8x64xf32, #tpu.memory_space<vmem>>, vector<1x32xf32>
    tpu.vector_store %arg5[%c3_38, %c32_39], %142 {strides = array<i32>} : memref<8x64xf32, #tpu.memory_space<vmem>>, vector<1x32xf32>,
    %cst_40 = arith.constant dense<0.000000e+00> : vector<1x192xf32>
    %144 = tpu.matmul %139, %1, %cst_40 {dimension_numbers = #tpu.dot_dimension_numbers<[1], [0], [0], [1], [0, 0, 1, 1], [], []>} : vector<1x64xf32>, vector<64x192xf32>, vector<1x192xf32> -> vector<1x192xf32>
    %145 = arith.addf %144, %3 : vector<1x192xf32>
    %146 = vector.extract_strided_slice %7 {offsets = [5, 0], sizes = [1, 192], strides = [1, 1]} : vector<8x192xf32> to vector<1x192xf32>
    %147 = vector.extract_strided_slice %146 {offsets = [0, 0], sizes = [1, 128], strides = [1, 1]} : vector<1x192xf32> to vector<1x128xf32>
    %148 = vector.extract_strided_slice %145 {offsets = [0, 0], sizes = [1, 128], strides = [1, 1]} : vector<1x192xf32> to vector<1x128xf32>
    %149 = arith.addf %147, %148 : vector<1x128xf32>
    %cst_41 = arith.constant 5.000000e-01 : f32
    %150 = vector.broadcast %cst_41 : f32 to vector<1x128xf32>
    %151 = arith.mulf %150, %149 : vector<1x128xf32>
    %152 = math.tanh %151 : vector<1x128xf32>
    %cst_42 = arith.constant 1.000000e+00 : f32
    %153 = vector.broadcast %cst_42 : f32 to vector<1x128xf32>
    %154 = arith.addf %153, %152 : vector<1x128xf32>
    %cst_43 = arith.constant 5.000000e-01 : f32
    %155 = vector.broadcast %cst_43 : f32 to vector<1x128xf32>
    %156 = arith.mulf %155, %154 : vector<1x128xf32>
    %157 = vector.extract_strided_slice %156 {offsets = [0, 0], sizes = [1, 64], strides = [1, 1]} : vector<1x128xf32> to vector<1x64xf32>
    %158 = vector.extract_strided_slice %156 {offsets = [0, 64], sizes = [1, 64], strides = [1, 1]} : vector<1x128xf32> to vector<1x64xf32>
    %159 = vector.extract_strided_slice %146 {offsets = [0, 128], sizes = [1, 64], strides = [1, 1]} : vector<1x192xf32> to vector<1x64xf32>
    %160 = vector.extract_strided_slice %145 {offsets = [0, 128], sizes = [1, 64], strides = [1, 1]} : vector<1x192xf32> to vector<1x64xf32>
    %161 = arith.mulf %157, %160 : vector<1x64xf32>
    %162 = arith.addf %159, %161 : vector<1x64xf32>
    %163 = math.tanh %162 : vector<1x64xf32>
    %164 = arith.subf %139, %163 : vector<1x64xf32>
    %165 = arith.mulf %158, %164 : vector<1x64xf32>
    %166 = arith.addf %163, %165 : vector<1x64xf32>
    %167 = vector.extract_strided_slice %166 {offsets = [0, 0], sizes = [1, 32], strides = [1, 1]} : vector<1x64xf32> to vector<1x32xf32>
    %c5_44 = arith.constant 5 : index
    %c0_45 = arith.constant 0 : index
    %168 = vector.load %arg5[%c5_44, %c0_45] : memref<8x64xf32, #tpu.memory_space<vmem>>, vector<1x32xf32>
    tpu.vector_store %arg5[%c5_44, %c0_45], %167 {strides = array<i32>} : memref<8x64xf32, #tpu.memory_space<vmem>>, vector<1x32xf32>,
    %169 = vector.extract_strided_slice %166 {offsets = [0, 32], sizes = [1, 32], strides = [1, 1]} : vector<1x64xf32> to vector<1x32xf32>
    %c2_46 = arith.constant 2 : index
    %c32_47 = arith.constant 32 : index
    %170 = vector.load %arg5[%c2_46, %c32_47] : memref<8x64xf32, #tpu.memory_space<vmem>>, vector<1x32xf32>
    tpu.vector_store %arg5[%c2_46, %c32_47], %169 {strides = array<i32>} : memref<8x64xf32, #tpu.memory_space<vmem>>, vector<1x32xf32>,
    %cst_48 = arith.constant dense<0.000000e+00> : vector<1x192xf32>
    %171 = tpu.matmul %166, %1, %cst_48 {dimension_numbers = #tpu.dot_dimension_numbers<[1], [0], [0], [1], [0, 0, 1, 1], [], []>} : vector<1x64xf32>, vector<64x192xf32>, vector<1x192xf32> -> vector<1x192xf32>
    %172 = arith.addf %171, %3 : vector<1x192xf32>
    %173 = vector.extract_strided_slice %7 {offsets = [6, 0], sizes = [1, 192], strides = [1, 1]} : vector<8x192xf32> to vector<1x192xf32>
    %174 = vector.extract_strided_slice %173 {offsets = [0, 0], sizes = [1, 128], strides = [1, 1]} : vector<1x192xf32> to vector<1x128xf32>
    %175 = vector.extract_strided_slice %172 {offsets = [0, 0], sizes = [1, 128], strides = [1, 1]} : vector<1x192xf32> to vector<1x128xf32>
    %176 = arith.addf %174, %175 : vector<1x128xf32>
    %cst_49 = arith.constant 5.000000e-01 : f32
    %177 = vector.broadcast %cst_49 : f32 to vector<1x128xf32>
    %178 = arith.mulf %177, %176 : vector<1x128xf32>
    %179 = math.tanh %178 : vector<1x128xf32>
    %cst_50 = arith.constant 1.000000e+00 : f32
    %180 = vector.broadcast %cst_50 : f32 to vector<1x128xf32>
    %181 = arith.addf %180, %179 : vector<1x128xf32>
    %cst_51 = arith.constant 5.000000e-01 : f32
    %182 = vector.broadcast %cst_51 : f32 to vector<1x128xf32>
    %183 = arith.mulf %182, %181 : vector<1x128xf32>
    %184 = vector.extract_strided_slice %183 {offsets = [0, 0], sizes = [1, 64], strides = [1, 1]} : vector<1x128xf32> to vector<1x64xf32>
    %185 = vector.extract_strided_slice %183 {offsets = [0, 64], sizes = [1, 64], strides = [1, 1]} : vector<1x128xf32> to vector<1x64xf32>
    %186 = vector.extract_strided_slice %173 {offsets = [0, 128], sizes = [1, 64], strides = [1, 1]} : vector<1x192xf32> to vector<1x64xf32>
    %187 = vector.extract_strided_slice %172 {offsets = [0, 128], sizes = [1, 64], strides = [1, 1]} : vector<1x192xf32> to vector<1x64xf32>
    %188 = arith.mulf %184, %187 : vector<1x64xf32>
    %189 = arith.addf %186, %188 : vector<1x64xf32>
    %190 = math.tanh %189 : vector<1x64xf32>
    %191 = arith.subf %166, %190 : vector<1x64xf32>
    %192 = arith.mulf %185, %191 : vector<1x64xf32>
    %193 = arith.addf %190, %192 : vector<1x64xf32>
    %194 = vector.extract_strided_slice %193 {offsets = [0, 0], sizes = [1, 32], strides = [1, 1]} : vector<1x64xf32> to vector<1x32xf32>
    %c6_52 = arith.constant 6 : index
    %c0_53 = arith.constant 0 : index
    %195 = vector.load %arg5[%c6_52, %c0_53] : memref<8x64xf32, #tpu.memory_space<vmem>>, vector<1x32xf32>
    tpu.vector_store %arg5[%c6_52, %c0_53], %194 {strides = array<i32>} : memref<8x64xf32, #tpu.memory_space<vmem>>, vector<1x32xf32>,
    %196 = vector.extract_strided_slice %193 {offsets = [0, 32], sizes = [1, 32], strides = [1, 1]} : vector<1x64xf32> to vector<1x32xf32>
    %c1_54 = arith.constant 1 : index
    %c32_55 = arith.constant 32 : index
    %197 = vector.load %arg5[%c1_54, %c32_55] : memref<8x64xf32, #tpu.memory_space<vmem>>, vector<1x32xf32>
    tpu.vector_store %arg5[%c1_54, %c32_55], %196 {strides = array<i32>} : memref<8x64xf32, #tpu.memory_space<vmem>>, vector<1x32xf32>,
    %cst_56 = arith.constant dense<0.000000e+00> : vector<1x192xf32>
    %198 = tpu.matmul %193, %1, %cst_56 {dimension_numbers = #tpu.dot_dimension_numbers<[1], [0], [0], [1], [0, 0, 1, 1], [], []>} : vector<1x64xf32>, vector<64x192xf32>, vector<1x192xf32> -> vector<1x192xf32>
    %199 = arith.addf %198, %3 : vector<1x192xf32>
    %200 = vector.extract_strided_slice %7 {offsets = [7, 0], sizes = [1, 192], strides = [1, 1]} : vector<8x192xf32> to vector<1x192xf32>
    %201 = vector.extract_strided_slice %200 {offsets = [0, 0], sizes = [1, 128], strides = [1, 1]} : vector<1x192xf32> to vector<1x128xf32>
    %202 = vector.extract_strided_slice %199 {offsets = [0, 0], sizes = [1, 128], strides = [1, 1]} : vector<1x192xf32> to vector<1x128xf32>
    %203 = arith.addf %201, %202 : vector<1x128xf32>
    %cst_57 = arith.constant 5.000000e-01 : f32
    %204 = vector.broadcast %cst_57 : f32 to vector<1x128xf32>
    %205 = arith.mulf %204, %203 : vector<1x128xf32>
    %206 = math.tanh %205 : vector<1x128xf32>
    %cst_58 = arith.constant 1.000000e+00 : f32
    %207 = vector.broadcast %cst_58 : f32 to vector<1x128xf32>
    %208 = arith.addf %207, %206 : vector<1x128xf32>
    %cst_59 = arith.constant 5.000000e-01 : f32
    %209 = vector.broadcast %cst_59 : f32 to vector<1x128xf32>
    %210 = arith.mulf %209, %208 : vector<1x128xf32>
    %211 = vector.extract_strided_slice %210 {offsets = [0, 0], sizes = [1, 64], strides = [1, 1]} : vector<1x128xf32> to vector<1x64xf32>
    %212 = vector.extract_strided_slice %210 {offsets = [0, 64], sizes = [1, 64], strides = [1, 1]} : vector<1x128xf32> to vector<1x64xf32>
    %213 = vector.extract_strided_slice %200 {offsets = [0, 128], sizes = [1, 64], strides = [1, 1]} : vector<1x192xf32> to vector<1x64xf32>
    %214 = vector.extract_strided_slice %199 {offsets = [0, 128], sizes = [1, 64], strides = [1, 1]} : vector<1x192xf32> to vector<1x64xf32>
    %215 = arith.mulf %211, %214 : vector<1x64xf32>
    %216 = arith.addf %213, %215 : vector<1x64xf32>
    %217 = math.tanh %216 : vector<1x64xf32>
    %218 = arith.subf %193, %217 : vector<1x64xf32>
    %219 = arith.mulf %212, %218 : vector<1x64xf32>
    %220 = arith.addf %217, %219 : vector<1x64xf32>
    %221 = vector.extract_strided_slice %220 {offsets = [0, 0], sizes = [1, 32], strides = [1, 1]} : vector<1x64xf32> to vector<1x32xf32>
    %c7_60 = arith.constant 7 : index
    %c0_61 = arith.constant 0 : index
    %222 = vector.load %arg5[%c7_60, %c0_61] : memref<8x64xf32, #tpu.memory_space<vmem>>, vector<1x32xf32>
    tpu.vector_store %arg5[%c7_60, %c0_61], %221 {strides = array<i32>} : memref<8x64xf32, #tpu.memory_space<vmem>>, vector<1x32xf32>,
    %223 = vector.extract_strided_slice %220 {offsets = [0, 32], sizes = [1, 32], strides = [1, 1]} : vector<1x64xf32> to vector<1x32xf32>
    %c0_62 = arith.constant 0 : index
    %c32_63 = arith.constant 32 : index
    %224 = vector.load %arg5[%c0_62, %c32_63] : memref<8x64xf32, #tpu.memory_space<vmem>>, vector<1x32xf32>
    tpu.vector_store %arg5[%c0_62, %c32_63], %223 {strides = array<i32>} : memref<8x64xf32, #tpu.memory_space<vmem>>, vector<1x32xf32>,
    %c0_64 = arith.constant 0 : index
    %c0_65 = arith.constant 0 : index
    %225 = vector.load %arg3[%c0_64, %c0_65] : memref<65x16xf32, #tpu.memory_space<vmem>>, vector<64x16xf32>
    %c64 = arith.constant 64 : index
    %c0_66 = arith.constant 0 : index
    %226 = vector.load %arg3[%c64, %c0_66] : memref<65x16xf32, #tpu.memory_space<vmem>>, vector<1x16xf32>
    %c0_67 = arith.constant 0 : index
    %c0_68 = arith.constant 0 : index
    %227 = vector.load %arg5[%c0_67, %c0_68] : memref<8x64xf32, #tpu.memory_space<vmem>>, vector<8x64xf32>
    %cst_69 = arith.constant dense<0.000000e+00> : vector<8x16xf32>
    %228 = tpu.matmul %227, %225, %cst_69 {dimension_numbers = #tpu.dot_dimension_numbers<[1], [0], [0], [1], [0, 0, 1, 1], [], []>} : vector<8x64xf32>, vector<64x16xf32>, vector<8x16xf32> -> vector<8x16xf32>
    %229 = vector.broadcast %226 : vector<1x16xf32> to vector<8x16xf32>
    %230 = arith.addf %228, %229 : vector<8x16xf32>
    %cst_70 = arith.constant dense<0xFF800000> : vector<8xf32>
    %231 = vector.multi_reduction <maximumf>, %230, %cst_70 [1] : vector<8x16xf32> to vector<8xf32>
    %232 = vector.shape_cast %231 : vector<8xf32> to vector<8x1xf32>
    %233 = vector.broadcast %232 : vector<8x1xf32> to vector<8x16xf32>
    %234 = arith.subf %230, %233 : vector<8x16xf32>
    %235 = math.exp %234 : vector<8x16xf32>
    %cst_71 = arith.constant dense<0.000000e+00> : vector<8xf32>
    %236 = vector.multi_reduction <add>, %235, %cst_71 [1] : vector<8x16xf32> to vector<8xf32>
    %237 = vector.shape_cast %236 : vector<8xf32> to vector<8x1xf32>
    %238 = math.log %237 : vector<8x1xf32>
    %239 = arith.addf %232, %238 : vector<8x1xf32>
    %240 = vector.broadcast %239 : vector<8x1xf32> to vector<8x16xf32>
    %241 = arith.subf %230, %240 : vector<8x16xf32>
    %c0_72 = arith.constant 0 : index
    %c0_73 = arith.constant 0 : index
    %242 = vector.load %arg4[%c0_72, %c0_73] : memref<8x16xf32, #tpu.memory_space<vmem>>, vector<8x16xf32>
    tpu.vector_store %arg4[%c0_72, %c0_73], %241 {strides = array<i32>} : memref<8x16xf32, #tpu.memory_space<vmem>>, vector<8x16xf32>,
    return
  }
}

</mosaic_0001>

<llo_original>
// kernel: tpu_custom_call.1
$region0: #{tpu_custom_call.1}
  #allocation0 [shape = 'u32[]', space=smem, size = 0x4, offset = 0x4, fixed_abs, tag = 'smem constant byte address 0x4 - core index']
  #allocation1 [shape = 'u32[144,128]{1,0:T(1,128)}', space=vmem, size = 0x12000, scoped, tag = 'internal scratch']
  #allocation2 [shape = 'f32[8,64]{1,0:T(8,128)}', space=vmem, size = 0x1000, scoped, tag = 'scratch operand']
  %s0 = inlined_call_operand.vmem [shape: f32[8,40], index: 0, kind: input, shape index: {}]
  %s1 = inlined_call_operand.vmem [shape: f32[1,64], index: 1, kind: input, shape index: {}]
  %s2 = inlined_call_operand.vmem [shape: f32[106,192], index: 2, kind: input, shape index: {}]
  %s3 = inlined_call_operand.vmem [shape: f32[65,16], index: 3, kind: input, shape index: {}]
  %s4 = inlined_call_operand.hbm [shape: f32[8,16], index: 4, kind: output, shape index: {}]
  %s5 = sld [smem:[#allocation0]]
  $region26: #{tpu_custom_call.1} parent=0
    _
  %s7 = ssub.s32 1, %s5
  %s8 = scalar_select 0, %s7, %s5
  $region1: #{tpu_custom_call.1} parent=0
    #allocation3 [shape = 'u8[4096]{0}', space=vmem, size = 0x1000, scoped, tag = 'output window, operand 0, single buffered']
    #allocation4 [shape = 's32[1]{0}', space=sflag, size = 0x4, scoped, tag = 'scoped memory for tpu_custom_call.1']
    %9 = vsyncpa [#allocation4], 0
    // Predicated region
    $region2: #{tpu_custom_call.1} parent=1 // pred_check
      _
    $region3: #{tpu_custom_call.1} parent=1 // pred_check_branch
      %11 = sbr.rel (0) target = $region5
    $region4: #{tpu_custom_call.1} parent=1 // pred_region
      _
    $region5: #{tpu_custom_call.1} parent=1 // pred_fallthru
      _
    // Predicated region
    $region6: #{tpu_custom_call.1} parent=1 // pred_check
      _
    $region7: #{tpu_custom_call.1} parent=1 // pred_check_branch
      %13 = sbr.rel (0) target = $region9
    $region8: #{tpu_custom_call.1} parent=1 // pred_region
      _
    $region9: #{tpu_custom_call.1} parent=1 // pred_fallthru
      _
    // Predicated region
    $region10: #{tpu_custom_call.1} parent=1 // pred_check
      _
    $region11: #{tpu_custom_call.1} parent=1 // pred_check_branch
      %15 = sbr.rel (0) target = $region13
    $region12: #{tpu_custom_call.1} parent=1 // pred_region
      _
    $region13: #{tpu_custom_call.1} parent=1 // pred_fallthru
      _
    // Predicated region
    $region14: #{tpu_custom_call.1} parent=1 // pred_check
      _
    $region15: #{tpu_custom_call.1} parent=1 // pred_check_branch
      %17 = sbr.rel (0) target = $region17
    $region16: #{tpu_custom_call.1} parent=1 // pred_region
      _
    $region17: #{tpu_custom_call.1} parent=1 // pred_fallthru
      _
    %v18 = vld [vmem:[%s2] sm:$0xff]
    %v19 = vld [vmem:[%s2 + $0x8] sm:$0xff]
    %v20 = vld [vmem:[%s2 + $0x10] sm:$0xff]
    %v21 = vld [vmem:[%s2 + $0x18] sm:$0xff]
    %v22 = vld [vmem:[%s2 + $0x20] sm:$0xff]
    %v23 = vld [vmem:[%s2 + $0x28] sm:$0xff]
    %v24 = vld [vmem:[%s2 + $0x30] sm:$0xff]
    %v25 = vld [vmem:[%s2 + $0x38] sm:$0xff]
    %v26 = vld [vmem:[%s2 + $0x40] sm:$0xff]
    %v27 = vld [vmem:[%s2 + $0x48] sm:$0xff]
    %v28 = vld [vmem:[%s2 + $0x50] sm:$0xff]
    %v29 = vld [vmem:[%s2 + $0x58] sm:$0xff]
    %v30 = vld [vmem:[%s2 + $0x60] sm:$0xff]
    %v31 = vld [vmem:[%s2 + $0x68] sm:$0xff]
    %v32 = vld [vmem:[%s2 + $0x70] sm:$0xff]
    %v33 = vld [vmem:[%s2 + $0x78] sm:$0xff]
    %v34 = vld [vmem:[%s2 + $0x80] sm:$0xff]
    %v35 = vld [vmem:[%s2 + $0x88] sm:$0xff]
    %v36 = vld [vmem:[%s2 + $0x90] sm:$0xff]
    %v37 = vld [vmem:[%s2 + $0x98] sm:$0xff]
    %v38 = vld [vmem:[%s2 + $0xa0] sm:$0xff]
    %v39 = vld [vmem:[%s2 + $0xa8] sm:$0xff]
    %v40 = vld [vmem:[%s2 + $0xb0] sm:$0xff]
    %v41 = vld [vmem:[%s2 + $0xb8] sm:$0xff]
    %v42 = vld [vmem:[%s2 + $0xc0] sm:$0xff]
    %v43 = vld [vmem:[%s2 + $0xc8] sm:$0xff]
    %s44 = scalar_lea.vmem %s2, 208
    %v45 = vld [vmem:[%s44] ss:$8 sm:$0x3]
    %s46 = scalar_lea.vmem %s2, 209
    %v47 = vld [vmem:[%s46] ss:$8 sm:$0x3]
    %v48 = vld [vmem:[%s0] sm:$0xff]
    %v50 = vlaneseq
    %v51 = vshrl.u32 %v50, 7
    %v52 = vsub.s32 0, %v51
    %v53 = vrot.slane %v45, %v52
    %v54 = vlaneseq
    %v55 = vshrl.u32 %v54, 7
    %v56 = vsub.s32 1, %v55
    %v57 = vrot.slane %v45, %v56
    %vm60 = vcmask 326656
    %v62 = vsel %vm60, %v48, 0
    %64 = vmatprep.subr.mxu0 %v19
    %65 = vmatpush1.msra.mxu0 %v18
    %66 = vmatprep.subr.mxu0 %v21
    %67 = vmatpush1.msra.mxu0 %v20
    %68 = vmatprep.subr.mxu0 %v23
    %69 = vmatpush1.msra.mxu0 %v22
    %70 = vmatprep.subr.mxu0 %v25
    %71 = vmatpush1.msra.mxu0 %v24
    %72 = vmatprep.subr.mxu0 %v27
    %73 = vmatpush1.msra.mxu0 %v26
    %74 = vmatprep.subr.mxu0 0.0
    %75 = vmatpush1.msra.mxu0 0.0
    %76 = vmatprep.subr.mxu0 0.0
    %77 = vmatpush1.msra.mxu0 0.0
    %78 = vmatprep.subr.mxu0 0.0
    %79 = vmatpush1.msra.mxu0 0.0
    %80 = vmatprep.subr.mxu0 0.0
    %81 = vmatpush1.msra.mxu0 0.0
    %82 = vmatprep.subr.mxu0 0.0
    %83 = vmatpush1.msra.mxu0 0.0
    %84 = vmatprep.subr.mxu0 0.0
    %85 = vmatpush1.msra.mxu0 0.0
    %86 = vmatprep.subr.mxu0 0.0
    %87 = vmatpush1.msra.mxu0 0.0
    %88 = vmatprep.subr.mxu0 0.0
    %89 = vmatpush1.msra.mxu0 0.0
    %90 = vmatprep.subr.mxu0 0.0
    %91 = vmatpush1.msra.mxu0 0.0
    %92 = vmatprep.subr.mxu0 0.0
    %93 = vmatpush1.msra.mxu0 0.0
    %94 = vmatprep.subr.mxu0 0.0
    %95 = vmatpush1.msra.mxu0 0.0
    %96 = vmatprep.subr.mxu0 0.0
    %97 = vmatpush1.msra.mxu0 0.0
    %98 = vmatprep.subr.mxu0 0.0
    %99 = vmatpush1.msra.mxu0 0.0
    %100 = vmatprep.subr.mxu0 0.0
    %101 = vmatpush1.msra.mxu0 0.0
    %102 = vmatprep.subr.mxu0 0.0
    %103 = vmatpush1.msra.mxu0 0.0
    %104 = vmatprep.subr.mxu0 0.0
    %105 = vmatpush1.msra.mxu0 0.0
    %106 = vmatprep.subr.mxu0 0.0
    %107 = vmatpush1.msra.mxu0 0.0
    %108 = vmatprep.subr.mxu0 0.0
    %109 = vmatpush1.msra.mxu0 0.0
    %110 = vmatprep.subr.mxu0 0.0
    %111 = vmatpush1.msra.mxu0 0.0
    %112 = vmatprep.subr.mxu0 0.0
    %113 = vmatpush1.msra.mxu0 0.0
    %114 = vmatprep.subr.mxu0 0.0
    %115 = vmatpush1.msra.mxu0 0.0
    %116 = vmatprep.subr.mxu0 0.0
    %117 = vmatpush1.msra.mxu0 0.0
    %118 = vmatprep.subr.mxu0 0.0
    %119 = vmatpush1.msra.mxu0 0.0
    %120 = vmatprep.subr.mxu0 0.0
    %121 = vmatpush1.msra.mxu0 0.0
    %122 = vmatprep.subr.mxu0 0.0
    %123 = vmatpush1.msra.mxu0 0.0
    %124 = vmatprep.subr.mxu0 0.0
    %125 = vmatpush1.msra.mxu0 0.0
    %126 = vmatprep.subr.mxu0 0.0
    %127 = vmatpush1.msra.mxu0 0.0
    %128 = vmatprep.mubr.f32.mxu0 0.0
    %129 = vmatmul.mubr.f32.gmra.mrb[0].mxu0 %v62
    %v130 = vpop.f32.mrb[0].mxu0
    %v131 = vadd.f32 %v53, %v130
    %v132 = vpop.f32.mrb[0].mxu0
    %v133 = vadd.f32 %v57, %v132
    %134 = vdwg.mxu0
    %v135 = vld [vmem:[%s1] sm:$0x1]
    %v137 = vlaneseq
    %v138 = vshrl.u32 %v137, 7
    %v139 = vsub.s32 0, %v138
    %v140 = vrot.slane %v47, %v139
    %v141 = vlaneseq
    %v142 = vshrl.u32 %v141, 7
    %v143 = vsub.s32 1, %v142
    %v144 = vrot.slane %v47, %v143
    %vm147 = vcmask 523264
    %v149 = vsel %vm147, %v135, 0
    %151 = vmatprep.subr.mxu0 %v29
    %152 = vmatpush1.msra.mxu0 %v28
    %153 = vmatprep.subr.mxu0 %v31
    %154 = vmatpush1.msra.mxu0 %v30
    %155 = vmatprep.subr.mxu0 %v33
    %156 = vmatpush1.msra.mxu0 %v32
    %157 = vmatprep.subr.mxu0 %v35
    %158 = vmatpush1.msra.mxu0 %v34
    %159 = vmatprep.subr.mxu0 %v37
    %160 = vmatpush1.msra.mxu0 %v36
    %161 = vmatprep.subr.mxu0 %v39
    %162 = vmatpush1.msra.mxu0 %v38
    %163 = vmatprep.subr.mxu0 %v41
    %164 = vmatpush1.msra.mxu0 %v40
    %165 = vmatprep.subr.mxu0 %v43
    %166 = vmatpush1.msra.mxu0 %v42
    %167 = vmatprep.subr.mxu0 0.0
    %168 = vmatpush1.msra.mxu0 0.0
    %169 = vmatprep.subr.mxu0 0.0
    %170 = vmatpush1.msra.mxu0 0.0
    %171 = vmatprep.subr.mxu0 0.0
    %172 = vmatpush1.msra.mxu0 0.0
    %173 = vmatprep.subr.mxu0 0.0
    %174 = vmatpush1.msra.mxu0 0.0
    %175 = vmatprep.subr.mxu0 0.0
    %176 = vmatpush1.msra.mxu0 0.0
    %177 = vmatprep.subr.mxu0 0.0
    %178 = vmatpush1.msra.mxu0 0.0
    %179 = vmatprep.subr.mxu0 0.0
    %180 = vmatpush1.msra.mxu0 0.0
    %181 = vmatprep.subr.mxu0 0.0
    %182 = vmatpush1.msra.mxu0 0.0
    %183 = vmatprep.subr.mxu0 0.0
    %184 = vmatpush1.msra.mxu0 0.0
    %185 = vmatprep.subr.mxu0 0.0
    %186 = vmatpush1.msra.mxu0 0.0
    %187 = vmatprep.subr.mxu0 0.0
    %188 = vmatpush1.msra.mxu0 0.0
    %189 = vmatprep.subr.mxu0 0.0
    %190 = vmatpush1.msra.mxu0 0.0
    %191 = vmatprep.subr.mxu0 0.0
    %192 = vmatpush1.msra.mxu0 0.0
    %193 = vmatprep.subr.mxu0 0.0
    %194 = vmatpush1.msra.mxu0 0.0
    %195 = vmatprep.subr.mxu0 0.0
    %196 = vmatpush1.msra.mxu0 0.0
    %197 = vmatprep.subr.mxu0 0.0
    %198 = vmatpush1.msra.mxu0 0.0
    %199 = vmatprep.subr.mxu0 0.0
    %200 = vmatpush1.msra.mxu0 0.0
    %201 = vmatprep.subr.mxu0 0.0
    %202 = vmatpush1.msra.mxu0 0.0
    %203 = vmatprep.subr.mxu0 0.0
    %204 = vmatpush1.msra.mxu0 0.0
    %205 = vmatprep.subr.mxu0 0.0
    %206 = vmatpush1.msra.mxu0 0.0
    %207 = vmatprep.subr.mxu0 0.0
    %208 = vmatpush1.msra.mxu0 0.0
    %209 = vmatprep.subr.mxu0 0.0
    %210 = vmatpush1.msra.mxu0 0.0
    %211 = vmatprep.subr.mxu0 0.0
    %212 = vmatpush1.msra.mxu0 0.0
    %213 = vmatprep.subr.mxu0 0.0
    %214 = vmatpush1.msra.mxu0 0.0
    %215 = vmatprep.mubr.f32.mxu0 0.0
    %216 = vmatmul.mubr.f32.gmra.mrb[0].mxu0 %v149
    %v217 = vpop.f32.mrb[0].mxu0
    %v218 = vadd.f32 %v140, %v217
    %v219 = vpop.f32.mrb[0].mxu0
    %v220 = vadd.f32 %v144, %v219
    %221 = vdwg.mxu0
    %v222 = vadd.f32 %v131, %v218
    %v223 = vmul.f32 %v222, 0.5
    %v224 = vtanh.pop %v223
    %v225 = vadd.f32 %v224, 1.0
    %v226 = vmul.f32 %v225, 0.5
    %v227 = vmul.f32 %v226, %v220
    %v228 = vadd.f32 %v133, %v227
    %v229 = vtanh.pop %v228
    %v230 = vsub.f32 %v135, %v229
    %v232 = vlaneseq
    %v233 = vshrl.u32 %v232, 7
    %v234 = vsub.s32 0, %v233
    %v235 = vrot.slane %v230, %v234
    %236 = vrot.lane.b32.xlu0 %v235, 64
    %v237 = vpop.permute.xlu0 %236
    %v239 = vmul.f32 %v226, %v237
    %241 = vrot.lane.b32.xlu0 %v239, 64
    %v242 = vpop.permute.xlu0 %241
    %v244 = vadd.f32 %v229, %v242
    %vm245 = vcmask 253952
    %246 = vst.msk [vmem:[#allocation2] sm:$0x1] %vm245, %v244
    %vm247 = vcmask 516352
    %248 = vst.msk [vmem:[#allocation2 + $0x7] sm:$0x1] %vm247, %v244
    %v250 = vsel %vm147, %v244, 0
    %252 = vmatprep.subr.mxu0 %v29
    %253 = vmatpush1.msra.mxu0 %v28
    %254 = vmatprep.subr.mxu0 %v31
    %255 = vmatpush1.msra.mxu0 %v30
    %256 = vmatprep.subr.mxu0 %v33
    %257 = vmatpush1.msra.mxu0 %v32
    %258 = vmatprep.subr.mxu0 %v35
    %259 = vmatpush1.msra.mxu0 %v34
    %260 = vmatprep.subr.mxu0 %v37
    %261 = vmatpush1.msra.mxu0 %v36
    %262 = vmatprep.subr.mxu0 %v39
    %263 = vmatpush1.msra.mxu0 %v38
    %264 = vmatprep.subr.mxu0 %v41
    %265 = vmatpush1.msra.mxu0 %v40
    %266 = vmatprep.subr.mxu0 %v43
    %267 = vmatpush1.msra.mxu0 %v42
    %268 = vmatprep.subr.mxu0 0.0
    %269 = vmatpush1.msra.mxu0 0.0
    %270 = vmatprep.subr.mxu0 0.0
    %271 = vmatpush1.msra.mxu0 0.0
    %272 = vmatprep.subr.mxu0 0.0
    %273 = vmatpush1.msra.mxu0 0.0
    %274 = vmatprep.subr.mxu0 0.0
    %275 = vmatpush1.msra.mxu0 0.0
    %276 = vmatprep.subr.mxu0 0.0
    %277 = vmatpush1.msra.mxu0 0.0
    %278 = vmatprep.subr.mxu0 0.0
    %279 = vmatpush1.msra.mxu0 0.0
    %280 = vmatprep.subr.mxu0 0.0
    %281 = vmatpush1.msra.mxu0 0.0
    %282 = vmatprep.subr.mxu0 0.0
    %283 = vmatpush1.msra.mxu0 0.0
    %284 = vmatprep.subr.mxu0 0.0
    %285 = vmatpush1.msra.mxu0 0.0
    %286 = vmatprep.subr.mxu0 0.0
    %287 = vmatpush1.msra.mxu0 0.0
    %288 = vmatprep.subr.mxu0 0.0
    %289 = vmatpush1.msra.mxu0 0.0
    %290 = vmatprep.subr.mxu0 0.0
    %291 = vmatpush1.msra.mxu0 0.0
    %292 = vmatprep.subr.mxu0 0.0
    %293 = vmatpush1.msra.mxu0 0.0
    %294 = vmatprep.subr.mxu0 0.0
    %295 = vmatpush1.msra.mxu0 0.0
    %296 = vmatprep.subr.mxu0 0.0
    %297 = vmatpush1.msra.mxu0 0.0
    %298 = vmatprep.subr.mxu0 0.0
    %299 = vmatpush1.msra.mxu0 0.0
    %300 = vmatprep.subr.mxu0 0.0
    %301 = vmatpush1.msra.mxu0 0.0
    %302 = vmatprep.subr.mxu0 0.0
    %303 = vmatpush1.msra.mxu0 0.0
    %304 = vmatprep.subr.mxu0 0.0
    %305 = vmatpush1.msra.mxu0 0.0
    %306 = vmatprep.subr.mxu0 0.0
    %307 = vmatpush1.msra.mxu0 0.0
    %308 = vmatprep.subr.mxu0 0.0
    %309 = vmatpush1.msra.mxu0 0.0
    %310 = vmatprep.subr.mxu0 0.0
    %311 = vmatpush1.msra.mxu0 0.0
    %312 = vmatprep.subr.mxu0 0.0
    %313 = vmatpush1.msra.mxu0 0.0
    %314 = vmatprep.subr.mxu0 0.0
    %315 = vmatpush1.msra.mxu0 0.0
    %316 = vmatprep.mubr.f32.mxu0 0.0
    %317 = vmatmul.mubr.f32.gmra.mrb[0].mxu0 %v250
    %v318 = vpop.f32.mrb[0].mxu0
    %v319 = vadd.f32 %v140, %v318
    %v320 = vpop.f32.mrb[0].mxu0
    %v321 = vadd.f32 %v144, %v320
    %322 = vdwg.mxu0
    %v324 = vrot.slane %v319, 7
    %v326 = vadd.f32 %v131, %v324
    %v327 = vmul.f32 %v326, 0.5
    %v328 = vtanh.pop %v327
    %v329 = vadd.f32 %v328, 1.0
    %v330 = vmul.f32 %v329, 0.5
    %v332 = vrot.slane %v321, 7
    %v334 = vmul.f32 %v330, %v332
    %v335 = vadd.f32 %v133, %v334
    %v336 = vtanh.pop %v335
    %v338 = vrot.slane %v336, 1
    %v340 = vsub.f32 %v244, %v338
    %v342 = vrot.slane %v340, 7
    %343 = vrot.lane.b32.xlu0 %v342, 64
    %v344 = vpop.permute.xlu0 %343
    %v346 = vmul.f32 %v330, %v344
    %348 = vrot.lane.b32.xlu0 %v346, 64
    %v349 = vpop.permute.xlu0 %348
    %v351 = vadd.f32 %v336, %v349
    %vm352 = vcmask 254977
    %353 = vst.msk [vmem:[#allocation2] sm:$0x2] %vm352, %v351
    %vm354 = vcmask 517377
    %355 = vst.msk [vmem:[#allocation2 + $0x5] sm:$0x2] %vm354, %v351
    %v357 = vrot.slane %v351, 1
    %v358 = vsel %vm147, %v357, 0
    %360 = vmatprep.subr.mxu0 %v29
    %361 = vmatpush1.msra.mxu0 %v28
    %362 = vmatprep.subr.mxu0 %v31
    %363 = vmatpush1.msra.mxu0 %v30
    %364 = vmatprep.subr.mxu0 %v33
    %365 = vmatpush1.msra.mxu0 %v32
    %366 = vmatprep.subr.mxu0 %v35
    %367 = vmatpush1.msra.mxu0 %v34
    %368 = vmatprep.subr.mxu0 %v37
    %369 = vmatpush1.msra.mxu0 %v36
    %370 = vmatprep.subr.mxu0 %v39
    %371 = vmatpush1.msra.mxu0 %v38
    %372 = vmatprep.subr.mxu0 %v41
    %373 = vmatpush1.msra.mxu0 %v40
    %374 = vmatprep.subr.mxu0 %v43
    %375 = vmatpush1.msra.mxu0 %v42
    %376 = vmatprep.subr.mxu0 0.0
    %377 = vmatpush1.msra.mxu0 0.0
    %378 = vmatprep.subr.mxu0 0.0
    %379 = vmatpush1.msra.mxu0 0.0
    %380 = vmatprep.subr.mxu0 0.0
    %381 = vmatpush1.msra.mxu0 0.0
    %382 = vmatprep.subr.mxu0 0.0
    %383 = vmatpush1.msra.mxu0 0.0
    %384 = vmatprep.subr.mxu0 0.0
    %385 = vmatpush1.msra.mxu0 0.0
    %386 = vmatprep.subr.mxu0 0.0
    %387 = vmatpush1.msra.mxu0 0.0
    %388 = vmatprep.subr.mxu0 0.0
    %389 = vmatpush1.msra.mxu0 0.0
    %390 = vmatprep.subr.mxu0 0.0
    %391 = vmatpush1.msra.mxu0 0.0
    %392 = vmatprep.subr.mxu0 0.0
    %393 = vmatpush1.msra.mxu0 0.0
    %394 = vmatprep.subr.mxu0 0.0
    %395 = vmatpush1.msra.mxu0 0.0
    %396 = vmatprep.subr.mxu0 0.0
    %397 = vmatpush1.msra.mxu0 0.0
    %398 = vmatprep.subr.mxu0 0.0
    %399 = vmatpush1.msra.mxu0 0.0
    %400 = vmatprep.subr.mxu0 0.0
    %401 = vmatpush1.msra.mxu0 0.0
    %402 = vmatprep.subr.mxu0 0.0
    %403 = vmatpush1.msra.mxu0 0.0
    %404 = vmatprep.subr.mxu0 0.0
    %405 = vmatpush1.msra.mxu0 0.0
    %406 = vmatprep.subr.mxu0 0.0
    %407 = vmatpush1.msra.mxu0 0.0
    %408 = vmatprep.subr.mxu0 0.0
    %409 = vmatpush1.msra.mxu0 0.0
    %410 = vmatprep.subr.mxu0 0.0
    %411 = vmatpush1.msra.mxu0 0.0
    %412 = vmatprep.subr.mxu0 0.0
    %413 = vmatpush1.msra.mxu0 0.0
    %414 = vmatprep.subr.mxu0 0.0
    %415 = vmatpush1.msra.mxu0 0.0
    %416 = vmatprep.subr.mxu0 0.0
    %417 = vmatpush1.msra.mxu0 0.0
    %418 = vmatprep.subr.mxu0 0.0
    %419 = vmatpush1.msra.mxu0 0.0
    %420 = vmatprep.subr.mxu0 0.0
    %421 = vmatpush1.msra.mxu0 0.0
    %422 = vmatprep.subr.mxu0 0.0
    %423 = vmatpush1.msra.mxu0 0.0
    %424 = vmatprep.mubr.f32.mxu0 0.0
    %425 = vmatmul.mubr.f32.gmra.mrb[0].mxu0 %v358
    %v426 = vpop.f32.mrb[0].mxu0
    %v427 = vadd.f32 %v140, %v426
    %v428 = vpop.f32.mrb[0].mxu0
    %v429 = vadd.f32 %v144, %v428
    %430 = vdwg.mxu0
    %v432 = vrot.slane %v427, 6
    %v434 = vadd.f32 %v131, %v432
    %v435 = vmul.f32 %v434, 0.5
    %v436 = vtanh.pop %v435
    %v437 = vadd.f32 %v436, 1.0
    %v438 = vmul.f32 %v437, 0.5
    %v440 = vrot.slane %v429, 6
    %v442 = vmul.f32 %v438, %v440
    %v443 = vadd.f32 %v133, %v442
    %v444 = vtanh.pop %v443
    %v446 = vrot.slane %v444, 1
    %v448 = vsub.f32 %v351, %v446
    %v450 = vrot.slane %v448, 7
    %451 = vrot.lane.b32.xlu0 %v450, 64
    %v452 = vpop.permute.xlu0 %451
    %v454 = vmul.f32 %v438, %v452
    %456 = vrot.lane.b32.xlu0 %v454, 64
    %v457 = vpop.permute.xlu0 %456
    %v459 = vadd.f32 %v444, %v457
    %vm460 = vcmask 256002
    %461 = vst.msk [vmem:[#allocation2] sm:$0x4] %vm460, %v459
    %vm462 = vcmask 518402
    %463 = vst.msk [vmem:[#allocation2 + $0x3] sm:$0x4] %vm462, %v459
    %v465 = vrot.slane %v459, 2
    %v466 = vsel %vm147, %v465, 0
    %468 = vmatprep.subr.mxu0 %v29
    %469 = vmatpush1.msra.mxu0 %v28
    %470 = vmatprep.subr.mxu0 %v31
    %471 = vmatpush1.msra.mxu0 %v30
    %472 = vmatprep.subr.mxu0 %v33
    %473 = vmatpush1.msra.mxu0 %v32
    %474 = vmatprep.subr.mxu0 %v35
    %475 = vmatpush1.msra.mxu0 %v34
    %476 = vmatprep.subr.mxu0 %v37
    %477 = vmatpush1.msra.mxu0 %v36
    %478 = vmatprep.subr.mxu0 %v39
    %479 = vmatpush1.msra.mxu0 %v38
    %480 = vmatprep.subr.mxu0 %v41
    %481 = vmatpush1.msra.mxu0 %v40
    %482 = vmatprep.subr.mxu0 %v43
    %483 = vmatpush1.msra.mxu0 %v42
    %484 = vmatprep.subr.mxu0 0.0
    %485 = vmatpush1.msra.mxu0 0.0
    %486 = vmatprep.subr.mxu0 0.0
    %487 = vmatpush1.msra.mxu0 0.0
    %488 = vmatprep.subr.mxu0 0.0
    %489 = vmatpush1.msra.mxu0 0.0
    %490 = vmatprep.subr.mxu0 0.0
    %491 = vmatpush1.msra.mxu0 0.0
    %492 = vmatprep.subr.mxu0 0.0
    %493 = vmatpush1.msra.mxu0 0.0
    %494 = vmatprep.subr.mxu0 0.0
    %495 = vmatpush1.msra.mxu0 0.0
    %496 = vmatprep.subr.mxu0 0.0
    %497 = vmatpush1.msra.mxu0 0.0
    %498 = vmatprep.subr.mxu0 0.0
    %499 = vmatpush1.msra.mxu0 0.0
    %500 = vmatprep.subr.mxu0 0.0
    %501 = vmatpush1.msra.mxu0 0.0
    %502 = vmatprep.subr.mxu0 0.0
    %503 = vmatpush1.msra.mxu0 0.0
    %504 = vmatprep.subr.mxu0 0.0
    %505 = vmatpush1.msra.mxu0 0.0
    %506 = vmatprep.subr.mxu0 0.0
    %507 = vmatpush1.msra.mxu0 0.0
    %508 = vmatprep.subr.mxu0 0.0
    %509 = vmatpush1.msra.mxu0 0.0
    %510 = vmatprep.subr.mxu0 0.0
    %511 = vmatpush1.msra.mxu0 0.0
    %512 = vmatprep.subr.mxu0 0.0
    %513 = vmatpush1.msra.mxu0 0.0
    %514 = vmatprep.subr.mxu0 0.0
    %515 = vmatpush1.msra.mxu0 0.0
    %516 = vmatprep.subr.mxu0 0.0
    %517 = vmatpush1.msra.mxu0 0.0
    %518 = vmatprep.subr.mxu0 0.0
    %519 = vmatpush1.msra.mxu0 0.0
    %520 = vmatprep.subr.mxu0 0.0
    %521 = vmatpush1.msra.mxu0 0.0
    %522 = vmatprep.subr.mxu0 0.0
    %523 = vmatpush1.msra.mxu0 0.0
    %524 = vmatprep.subr.mxu0 0.0
    %525 = vmatpush1.msra.mxu0 0.0
    %526 = vmatprep.subr.mxu0 0.0
    %527 = vmatpush1.msra.mxu0 0.0
    %528 = vmatprep.subr.mxu0 0.0
    %529 = vmatpush1.msra.mxu0 0.0
    %530 = vmatprep.subr.mxu0 0.0
    %531 = vmatpush1.msra.mxu0 0.0
    %532 = vmatprep.mubr.f32.mxu0 0.0
    %533 = vmatmul.mubr.f32.gmra.mrb[0].mxu0 %v466
    %v534 = vpop.f32.mrb[0].mxu0
    %v535 = vadd.f32 %v140, %v534
    %v536 = vpop.f32.mrb[0].mxu0
    %v537 = vadd.f32 %v144, %v536
    %538 = vdwg.mxu0
    %v540 = vrot.slane %v535, 5
    %v542 = vadd.f32 %v131, %v540
    %v543 = vmul.f32 %v542, 0.5
    %v544 = vtanh.pop %v543
    %v545 = vadd.f32 %v544, 1.0
    %v546 = vmul.f32 %v545, 0.5
    %v548 = vrot.slane %v537, 5
    %v550 = vmul.f32 %v546, %v548
    %v551 = vadd.f32 %v133, %v550
    %v552 = vtanh.pop %v551
    %v554 = vrot.slane %v552, 1
    %v556 = vsub.f32 %v459, %v554
    %v558 = vrot.slane %v556, 7
    %559 = vrot.lane.b32.xlu0 %v558, 64
    %v560 = vpop.permute.xlu0 %559
    %v562 = vmul.f32 %v546, %v560
    %564 = vrot.lane.b32.xlu0 %v562, 64
    %v565 = vpop.permute.xlu0 %564
    %v567 = vadd.f32 %v552, %v565
    %vm568 = vcmask 257027
    %569 = vst.msk [vmem:[#allocation2] sm:$0x8] %vm568, %v567
    %vm570 = vcmask 519427
    %571 = vst.msk [vmem:[#allocation2 + $0x1] sm:$0x8] %vm570, %v567
    %v573 = vrot.slane %v567, 3
    %v574 = vsel %vm147, %v573, 0
    %576 = vmatprep.subr.mxu0 %v29
    %577 = vmatpush1.msra.mxu0 %v28
    %578 = vmatprep.subr.mxu0 %v31
    %579 = vmatpush1.msra.mxu0 %v30
    %580 = vmatprep.subr.mxu0 %v33
    %581 = vmatpush1.msra.mxu0 %v32
    %582 = vmatprep.subr.mxu0 %v35
    %583 = vmatpush1.msra.mxu0 %v34
    %584 = vmatprep.subr.mxu0 %v37
    %585 = vmatpush1.msra.mxu0 %v36
    %586 = vmatprep.subr.mxu0 %v39
    %587 = vmatpush1.msra.mxu0 %v38
    %588 = vmatprep.subr.mxu0 %v41
    %589 = vmatpush1.msra.mxu0 %v40
    %590 = vmatprep.subr.mxu0 %v43
    %591 = vmatpush1.msra.mxu0 %v42
    %592 = vmatprep.subr.mxu0 0.0
    %593 = vmatpush1.msra.mxu0 0.0
    %594 = vmatprep.subr.mxu0 0.0
    %595 = vmatpush1.msra.mxu0 0.0
    %596 = vmatprep.subr.mxu0 0.0
    %597 = vmatpush1.msra.mxu0 0.0
    %598 = vmatprep.subr.mxu0 0.0
    %599 = vmatpush1.msra.mxu0 0.0
    %600 = vmatprep.subr.mxu0 0.0
    %601 = vmatpush1.msra.mxu0 0.0
    %602 = vmatprep.subr.mxu0 0.0
    %603 = vmatpush1.msra.mxu0 0.0
    %604 = vmatprep.subr.mxu0 0.0
    %605 = vmatpush1.msra.mxu0 0.0
    %606 = vmatprep.subr.mxu0 0.0
    %607 = vmatpush1.msra.mxu0 0.0
    %608 = vmatprep.subr.mxu0 0.0
    %609 = vmatpush1.msra.mxu0 0.0
    %610 = vmatprep.subr.mxu0 0.0
    %611 = vmatpush1.msra.mxu0 0.0
    %612 = vmatprep.subr.mxu0 0.0
    %613 = vmatpush1.msra.mxu0 0.0
    %614 = vmatprep.subr.mxu0 0.0
    %615 = vmatpush1.msra.mxu0 0.0
    %616 = vmatprep.subr.mxu0 0.0
    %617 = vmatpush1.msra.mxu0 0.0
    %618 = vmatprep.subr.mxu0 0.0
    %619 = vmatpush1.msra.mxu0 0.0
    %620 = vmatprep.subr.mxu0 0.0
    %621 = vmatpush1.msra.mxu0 0.0
    %622 = vmatprep.subr.mxu0 0.0
    %623 = vmatpush1.msra.mxu0 0.0
    %624 = vmatprep.subr.mxu0 0.0
    %625 = vmatpush1.msra.mxu0 0.0
    %626 = vmatprep.subr.mxu0 0.0
    %627 = vmatpush1.msra.mxu0 0.0
    %628 = vmatprep.subr.mxu0 0.0
    %629 = vmatpush1.msra.mxu0 0.0
    %630 = vmatprep.subr.mxu0 0.0
    %631 = vmatpush1.msra.mxu0 0.0
    %632 = vmatprep.subr.mxu0 0.0
    %633 = vmatpush1.msra.mxu0 0.0
    %634 = vmatprep.subr.mxu0 0.0
    %635 = vmatpush1.msra.mxu0 0.0
    %636 = vmatprep.subr.mxu0 0.0
    %637 = vmatpush1.msra.mxu0 0.0
    %638 = vmatprep.subr.mxu0 0.0
    %639 = vmatpush1.msra.mxu0 0.0
    %640 = vmatprep.mubr.f32.mxu0 0.0
    %641 = vmatmul.mubr.f32.gmra.mrb[0].mxu0 %v574
    %v642 = vpop.f32.mrb[0].mxu0
    %v643 = vadd.f32 %v140, %v642
    %v644 = vpop.f32.mrb[0].mxu0
    %v645 = vadd.f32 %v144, %v644
    %646 = vdwg.mxu0
    %v648 = vrot.slane %v643, 4
    %v650 = vadd.f32 %v131, %v648
    %v651 = vmul.f32 %v650, 0.5
    %v652 = vtanh.pop %v651
    %v653 = vadd.f32 %v652, 1.0
    %v654 = vmul.f32 %v653, 0.5
    %v656 = vrot.slane %v645, 4
    %v658 = vmul.f32 %v654, %v656
    %v659 = vadd.f32 %v133, %v658
    %v660 = vtanh.pop %v659
    %v662 = vrot.slane %v660, 1
    %v664 = vsub.f32 %v567, %v662
    %v666 = vrot.slane %v664, 7
    %667 = vrot.lane.b32.xlu0 %v666, 64
    %v668 = vpop.permute.xlu0 %667
    %v670 = vmul.f32 %v654, %v668
    %672 = vrot.lane.b32.xlu0 %v670, 64
    %v673 = vpop.permute.xlu0 %672
    %v675 = vadd.f32 %v660, %v673
    %vm676 = vcmask 258052
    %677 = vst.msk [vmem:[#allocation2] sm:$0x10] %vm676, %v675
    %vm678 = vcmask 520452
    %679 = vst.msk [vmem:[#allocation2 - $0x1] sm:$0x10] %vm678, %v675
    %v681 = vrot.slane %v675, 4
    %v682 = vsel %vm147, %v681, 0
    %684 = vmatprep.subr.mxu0 %v29
    %685 = vmatpush1.msra.mxu0 %v28
    %686 = vmatprep.subr.mxu0 %v31
    %687 = vmatpush1.msra.mxu0 %v30
    %688 = vmatprep.subr.mxu0 %v33
    %689 = vmatpush1.msra.mxu0 %v32
    %690 = vmatprep.subr.mxu0 %v35
    %691 = vmatpush1.msra.mxu0 %v34
    %692 = vmatprep.subr.mxu0 %v37
    %693 = vmatpush1.msra.mxu0 %v36
    %694 = vmatprep.subr.mxu0 %v39
    %695 = vmatpush1.msra.mxu0 %v38
    %696 = vmatprep.subr.mxu0 %v41
    %697 = vmatpush1.msra.mxu0 %v40
    %698 = vmatprep.subr.mxu0 %v43
    %699 = vmatpush1.msra.mxu0 %v42
    %700 = vmatprep.subr.mxu0 0.0
    %701 = vmatpush1.msra.mxu0 0.0
    %702 = vmatprep.subr.mxu0 0.0
    %703 = vmatpush1.msra.mxu0 0.0
    %704 = vmatprep.subr.mxu0 0.0
    %705 = vmatpush1.msra.mxu0 0.0
    %706 = vmatprep.subr.mxu0 0.0
    %707 = vmatpush1.msra.mxu0 0.0
    %708 = vmatprep.subr.mxu0 0.0
    %709 = vmatpush1.msra.mxu0 0.0
    %710 = vmatprep.subr.mxu0 0.0
    %711 = vmatpush1.msra.mxu0 0.0
    %712 = vmatprep.subr.mxu0 0.0
    %713 = vmatpush1.msra.mxu0 0.0
    %714 = vmatprep.subr.mxu0 0.0
    %715 = vmatpush1.msra.mxu0 0.0
    %716 = vmatprep.subr.mxu0 0.0
    %717 = vmatpush1.msra.mxu0 0.0
    %718 = vmatprep.subr.mxu0 0.0
    %719 = vmatpush1.msra.mxu0 0.0
    %720 = vmatprep.subr.mxu0 0.0
    %721 = vmatpush1.msra.mxu0 0.0
    %722 = vmatprep.subr.mxu0 0.0
    %723 = vmatpush1.msra.mxu0 0.0
    %724 = vmatprep.subr.mxu0 0.0
    %725 = vmatpush1.msra.mxu0 0.0
    %726 = vmatprep.subr.mxu0 0.0
    %727 = vmatpush1.msra.mxu0 0.0
    %728 = vmatprep.subr.mxu0 0.0
    %729 = vmatpush1.msra.mxu0 0.0
    %730 = vmatprep.subr.mxu0 0.0
    %731 = vmatpush1.msra.mxu0 0.0
    %732 = vmatprep.subr.mxu0 0.0
    %733 = vmatpush1.msra.mxu0 0.0
    %734 = vmatprep.subr.mxu0 0.0
    %735 = vmatpush1.msra.mxu0 0.0
    %736 = vmatprep.subr.mxu0 0.0
    %737 = vmatpush1.msra.mxu0 0.0
    %738 = vmatprep.subr.mxu0 0.0
    %739 = vmatpush1.msra.mxu0 0.0
    %740 = vmatprep.subr.mxu0 0.0
    %741 = vmatpush1.msra.mxu0 0.0
    %742 = vmatprep.subr.mxu0 0.0
    %743 = vmatpush1.msra.mxu0 0.0
    %744 = vmatprep.subr.mxu0 0.0
    %745 = vmatpush1.msra.mxu0 0.0
    %746 = vmatprep.subr.mxu0 0.0
    %747 = vmatpush1.msra.mxu0 0.0
    %748 = vmatprep.mubr.f32.mxu0 0.0
    %749 = vmatmul.mubr.f32.gmra.mrb[0].mxu0 %v682
    %v750 = vpop.f32.mrb[0].mxu0
    %v751 = vadd.f32 %v140, %v750
    %v752 = vpop.f32.mrb[0].mxu0
    %v753 = vadd.f32 %v144, %v752
    %754 = vdwg.mxu0
    %v756 = vrot.slane %v751, 3
    %v758 = vadd.f32 %v131, %v756
    %v759 = vmul.f32 %v758, 0.5
    %v760 = vtanh.pop %v759
    %v761 = vadd.f32 %v760, 1.0
    %v762 = vmul.f32 %v761, 0.5
    %v764 = vrot.slane %v753, 3
    %v766 = vmul.f32 %v762, %v764
    %v767 = vadd.f32 %v133, %v766
    %v768 = vtanh.pop %v767
    %v770 = vrot.slane %v768, 1
    %v772 = vsub.f32 %v675, %v770
    %v774 = vrot.slane %v772, 7
    %775 = vrot.lane.b32.xlu0 %v774, 64
    %v776 = vpop.permute.xlu0 %775
    %v778 = vmul.f32 %v762, %v776
    %780 = vrot.lane.b32.xlu0 %v778, 64
    %v781 = vpop.permute.xlu0 %780
    %v783 = vadd.f32 %v768, %v781
    %vm784 = vcmask 259077
    %785 = vst.msk [vmem:[#allocation2] sm:$0x20] %vm784, %v783
    %vm786 = vcmask 521477
    %787 = vst.msk [vmem:[#allocation2 - $0x3] sm:$0x20] %vm786, %v783
    %v789 = vrot.slane %v783, 5
    %v790 = vsel %vm147, %v789, 0
    %792 = vmatprep.subr.mxu0 %v29
    %793 = vmatpush1.msra.mxu0 %v28
    %794 = vmatprep.subr.mxu0 %v31
    %795 = vmatpush1.msra.mxu0 %v30
    %796 = vmatprep.subr.mxu0 %v33
    %797 = vmatpush1.msra.mxu0 %v32
    %798 = vmatprep.subr.mxu0 %v35
    %799 = vmatpush1.msra.mxu0 %v34
    %800 = vmatprep.subr.mxu0 %v37
    %801 = vmatpush1.msra.mxu0 %v36
    %802 = vmatprep.subr.mxu0 %v39
    %803 = vmatpush1.msra.mxu0 %v38
    %804 = vmatprep.subr.mxu0 %v41
    %805 = vmatpush1.msra.mxu0 %v40
    %806 = vmatprep.subr.mxu0 %v43
    %807 = vmatpush1.msra.mxu0 %v42
    %808 = vmatprep.subr.mxu0 0.0
    %809 = vmatpush1.msra.mxu0 0.0
    %810 = vmatprep.subr.mxu0 0.0
    %811 = vmatpush1.msra.mxu0 0.0
    %812 = vmatprep.subr.mxu0 0.0
    %813 = vmatpush1.msra.mxu0 0.0
    %814 = vmatprep.subr.mxu0 0.0
    %815 = vmatpush1.msra.mxu0 0.0
    %816 = vmatprep.subr.mxu0 0.0
    %817 = vmatpush1.msra.mxu0 0.0
    %818 = vmatprep.subr.mxu0 0.0
    %819 = vmatpush1.msra.mxu0 0.0
    %820 = vmatprep.subr.mxu0 0.0
    %821 = vmatpush1.msra.mxu0 0.0
    %822 = vmatprep.subr.mxu0 0.0
    %823 = vmatpush1.msra.mxu0 0.0
    %824 = vmatprep.subr.mxu0 0.0
    %825 = vmatpush1.msra.mxu0 0.0
    %826 = vmatprep.subr.mxu0 0.0
    %827 = vmatpush1.msra.mxu0 0.0
    %828 = vmatprep.subr.mxu0 0.0
    %829 = vmatpush1.msra.mxu0 0.0
    %830 = vmatprep.subr.mxu0 0.0
    %831 = vmatpush1.msra.mxu0 0.0
    %832 = vmatprep.subr.mxu0 0.0
    %833 = vmatpush1.msra.mxu0 0.0
    %834 = vmatprep.subr.mxu0 0.0
    %835 = vmatpush1.msra.mxu0 0.0
    %836 = vmatprep.subr.mxu0 0.0
    %837 = vmatpush1.msra.mxu0 0.0
    %838 = vmatprep.subr.mxu0 0.0
    %839 = vmatpush1.msra.mxu0 0.0
    %840 = vmatprep.subr.mxu0 0.0
    %841 = vmatpush1.msra.mxu0 0.0
    %842 = vmatprep.subr.mxu0 0.0
    %843 = vmatpush1.msra.mxu0 0.0
    %844 = vmatprep.subr.mxu0 0.0
    %845 = vmatpush1.msra.mxu0 0.0
    %846 = vmatprep.subr.mxu0 0.0
    %847 = vmatpush1.msra.mxu0 0.0
    %848 = vmatprep.subr.mxu0 0.0
    %849 = vmatpush1.msra.mxu0 0.0
    %850 = vmatprep.subr.mxu0 0.0
    %851 = vmatpush1.msra.mxu0 0.0
    %852 = vmatprep.subr.mxu0 0.0
    %853 = vmatpush1.msra.mxu0 0.0
    %854 = vmatprep.subr.mxu0 0.0
    %855 = vmatpush1.msra.mxu0 0.0
    %856 = vmatprep.mubr.f32.mxu0 0.0
    %857 = vmatmul.mubr.f32.gmra.mrb[0].mxu0 %v790
    %v858 = vpop.f32.mrb[0].mxu0
    %v859 = vadd.f32 %v140, %v858
    %v860 = vpop.f32.mrb[0].mxu0
    %v861 = vadd.f32 %v144, %v860
    %862 = vdwg.mxu0
    %v864 = vrot.slane %v859, 2
    %v866 = vadd.f32 %v131, %v864
    %v867 = vmul.f32 %v866, 0.5
    %v868 = vtanh.pop %v867
    %v869 = vadd.f32 %v868, 1.0
    %v870 = vmul.f32 %v869, 0.5
    %v872 = vrot.slane %v861, 2
    %v874 = vmul.f32 %v870, %v872
    %v875 = vadd.f32 %v133, %v874
    %v876 = vtanh.pop %v875
    %v878 = vrot.slane %v876, 1
    %v880 = vsub.f32 %v783, %v878
    %v882 = vrot.slane %v880, 7
    %883 = vrot.lane.b32.xlu0 %v882, 64
    %v884 = vpop.permute.xlu0 %883
    %v886 = vmul.f32 %v870, %v884
    %888 = vrot.lane.b32.xlu0 %v886, 64
    %v889 = vpop.permute.xlu0 %888
    %v891 = vadd.f32 %v876, %v889
    %vm892 = vcmask 260102
    %893 = vst.msk [vmem:[#allocation2] sm:$0x40] %vm892, %v891
    %vm894 = vcmask 522502
    %895 = vst.msk [vmem:[#allocation2 - $0x5] sm:$0x40] %vm894, %v891
    %v897 = vrot.slane %v891, 6
    %v898 = vsel %vm147, %v897, 0
    %900 = vmatprep.subr.mxu0 %v29
    %901 = vmatpush1.msra.mxu0 %v28
    %902 = vmatprep.subr.mxu0 %v31
    %903 = vmatpush1.msra.mxu0 %v30
    %904 = vmatprep.subr.mxu0 %v33
    %905 = vmatpush1.msra.mxu0 %v32
    %906 = vmatprep.subr.mxu0 %v35
    %907 = vmatpush1.msra.mxu0 %v34
    %908 = vmatprep.subr.mxu0 %v37
    %909 = vmatpush1.msra.mxu0 %v36
    %910 = vmatprep.subr.mxu0 %v39
    %911 = vmatpush1.msra.mxu0 %v38
    %912 = vmatprep.subr.mxu0 %v41
    %913 = vmatpush1.msra.mxu0 %v40
    %914 = vmatprep.subr.mxu0 %v43
    %915 = vmatpush1.msra.mxu0 %v42
    %916 = vmatprep.subr.mxu0 0.0
    %917 = vmatpush1.msra.mxu0 0.0
    %918 = vmatprep.subr.mxu0 0.0
    %919 = vmatpush1.msra.mxu0 0.0
    %920 = vmatprep.subr.mxu0 0.0
    %921 = vmatpush1.msra.mxu0 0.0
    %922 = vmatprep.subr.mxu0 0.0
    %923 = vmatpush1.msra.mxu0 0.0
    %924 = vmatprep.subr.mxu0 0.0
    %925 = vmatpush1.msra.mxu0 0.0
    %926 = vmatprep.subr.mxu0 0.0
    %927 = vmatpush1.msra.mxu0 0.0
    %928 = vmatprep.subr.mxu0 0.0
    %929 = vmatpush1.msra.mxu0 0.0
    %930 = vmatprep.subr.mxu0 0.0
    %931 = vmatpush1.msra.mxu0 0.0
    %932 = vmatprep.subr.mxu0 0.0
    %933 = vmatpush1.msra.mxu0 0.0
    %934 = vmatprep.subr.mxu0 0.0
    %935 = vmatpush1.msra.mxu0 0.0
    %936 = vmatprep.subr.mxu0 0.0
    %937 = vmatpush1.msra.mxu0 0.0
    %938 = vmatprep.subr.mxu0 0.0
    %939 = vmatpush1.msra.mxu0 0.0
    %940 = vmatprep.subr.mxu0 0.0
    %941 = vmatpush1.msra.mxu0 0.0
    %942 = vmatprep.subr.mxu0 0.0
    %943 = vmatpush1.msra.mxu0 0.0
    %944 = vmatprep.subr.mxu0 0.0
    %945 = vmatpush1.msra.mxu0 0.0
    %946 = vmatprep.subr.mxu0 0.0
    %947 = vmatpush1.msra.mxu0 0.0
    %948 = vmatprep.subr.mxu0 0.0
    %949 = vmatpush1.msra.mxu0 0.0
    %950 = vmatprep.subr.mxu0 0.0
    %951 = vmatpush1.msra.mxu0 0.0
    %952 = vmatprep.subr.mxu0 0.0
    %953 = vmatpush1.msra.mxu0 0.0
    %954 = vmatprep.subr.mxu0 0.0
    %955 = vmatpush1.msra.mxu0 0.0
    %956 = vmatprep.subr.mxu0 0.0
    %957 = vmatpush1.msra.mxu0 0.0
    %958 = vmatprep.subr.mxu0 0.0
    %959 = vmatpush1.msra.mxu0 0.0
    %960 = vmatprep.subr.mxu0 0.0
    %961 = vmatpush1.msra.mxu0 0.0
    %962 = vmatprep.subr.mxu0 0.0
    %963 = vmatpush1.msra.mxu0 0.0
    %964 = vmatprep.mubr.f32.mxu0 0.0
    %965 = vmatmul.mubr.f32.gmra.mrb[0].mxu0 %v898
    %v966 = vpop.f32.mrb[0].mxu0
    %v967 = vadd.f32 %v140, %v966
    %v968 = vpop.f32.mrb[0].mxu0
    %v969 = vadd.f32 %v144, %v968
    %970 = vdwg.mxu0
    %v972 = vrot.slane %v967, 1
    %v974 = vadd.f32 %v131, %v972
    %v975 = vmul.f32 %v974, 0.5
    %v976 = vtanh.pop %v975
    %v977 = vadd.f32 %v976, 1.0
    %v978 = vmul.f32 %v977, 0.5
    %v980 = vrot.slane %v969, 1
    %v982 = vmul.f32 %v978, %v980
    %v983 = vadd.f32 %v133, %v982
    %v984 = vtanh.pop %v983
    %v986 = vrot.slane %v984, 1
    %v988 = vsub.f32 %v891, %v986
    %v990 = vrot.slane %v988, 7
    %991 = vrot.lane.b32.xlu0 %v990, 64
    %v992 = vpop.permute.xlu0 %991
    %v994 = vmul.f32 %v978, %v992
    %996 = vrot.lane.b32.xlu0 %v994, 64
    %v997 = vpop.permute.xlu0 %996
    %v999 = vadd.f32 %v984, %v997
    %vm1000 = vcmask 261127
    %1001 = vst.msk [vmem:[#allocation2] sm:$0x80] %vm1000, %v999
    %vm1002 = vcmask 523527
    %1003 = vst.msk [vmem:[#allocation2 - $0x7] sm:$0x80] %vm1002, %v999
    %v1004 = vld [vmem:[%s3] sm:$0xff]
    %v1005 = vld [vmem:[%s3 + $0x8] sm:$0xff]
    %v1006 = vld [vmem:[%s3 + $0x10] sm:$0xff]
    %v1007 = vld [vmem:[%s3 + $0x18] sm:$0xff]
    %v1008 = vld [vmem:[%s3 + $0x20] sm:$0xff]
    %v1009 = vld [vmem:[%s3 + $0x28] sm:$0xff]
    %v1010 = vld [vmem:[%s3 + $0x30] sm:$0xff]
    %v1011 = vld [vmem:[%s3 + $0x38] sm:$0xff]
    %v1012 = vld [vmem:[%s3 + $0x40] sm:$0x1]
    %v1013 = vld [vmem:[#allocation2] sm:$0xff]
    %v1014 = vlaneseq
    %v1015 = vshrl.u32 %v1014, 7
    %v1016 = vsub.s32 0, %v1015
    %v1017 = vrot.slane %v1012, %v1016
    %v1019 = vsel %vm147, %v1013, 0
    %1021 = vmatprep.subr.mxu0 0.0
    %1022 = vmatpush1.msra.mxu0 %v1004
    %1023 = vmatprep.subr.mxu0 0.0
    %1024 = vmatpush1.msra.mxu0 %v1005
    %1025 = vmatprep.subr.mxu0 0.0
    %1026 = vmatpush1.msra.mxu0 %v1006
    %1027 = vmatprep.subr.mxu0 0.0
    %1028 = vmatpush1.msra.mxu0 %v1007
    %1029 = vmatprep.subr.mxu0 0.0
    %1030 = vmatpush1.msra.mxu0 %v1008
    %1031 = vmatprep.subr.mxu0 0.0
    %1032 = vmatpush1.msra.mxu0 %v1009
    %1033 = vmatprep.subr.mxu0 0.0
    %1034 = vmatpush1.msra.mxu0 %v1010
    %1035 = vmatprep.subr.mxu0 0.0
    %1036 = vmatpush1.msra.mxu0 %v1011
    %1037 = vmatprep.subr.mxu0 0.0
    %1038 = vmatpush1.msra.mxu0 0.0
    %1039 = vmatprep.subr.mxu0 0.0
    %1040 = vmatpush1.msra.mxu0 0.0
    %1041 = vmatprep.subr.mxu0 0.0
    %1042 = vmatpush1.msra.mxu0 0.0
    %1043 = vmatprep.subr.mxu0 0.0
    %1044 = vmatpush1.msra.mxu0 0.0
    %1045 = vmatprep.subr.mxu0 0.0
    %1046 = vmatpush1.msra.mxu0 0.0
    %1047 = vmatprep.subr.mxu0 0.0
    %1048 = vmatpush1.msra.mxu0 0.0
    %1049 = vmatprep.subr.mxu0 0.0
    %1050 = vmatpush1.msra.mxu0 0.0
    %1051 = vmatprep.subr.mxu0 0.0
    %1052 = vmatpush1.msra.mxu0 0.0
    %1053 = vmatprep.subr.mxu0 0.0
    %1054 = vmatpush1.msra.mxu0 0.0
    %1055 = vmatprep.subr.mxu0 0.0
    %1056 = vmatpush1.msra.mxu0 0.0
    %1057 = vmatprep.subr.mxu0 0.0
    %1058 = vmatpush1.msra.mxu0 0.0
    %1059 = vmatprep.subr.mxu0 0.0
    %1060 = vmatpush1.msra.mxu0 0.0
    %1061 = vmatprep.subr.mxu0 0.0
    %1062 = vmatpush1.msra.mxu0 0.0
    %1063 = vmatprep.subr.mxu0 0.0
    %1064 = vmatpush1.msra.mxu0 0.0
    %1065 = vmatprep.subr.mxu0 0.0
    %1066 = vmatpush1.msra.mxu0 0.0
    %1067 = vmatprep.subr.mxu0 0.0
    %1068 = vmatpush1.msra.mxu0 0.0
    %1069 = vmatprep.subr.mxu0 0.0
    %1070 = vmatpush1.msra.mxu0 0.0
    %1071 = vmatprep.subr.mxu0 0.0
    %1072 = vmatpush1.msra.mxu0 0.0
    %1073 = vmatprep.subr.mxu0 0.0
    %1074 = vmatpush1.msra.mxu0 0.0
    %1075 = vmatprep.subr.mxu0 0.0
    %1076 = vmatpush1.msra.mxu0 0.0
    %1077 = vmatprep.subr.mxu0 0.0
    %1078 = vmatpush1.msra.mxu0 0.0
    %1079 = vmatprep.subr.mxu0 0.0
    %1080 = vmatpush1.msra.mxu0 0.0
    %1081 = vmatprep.subr.mxu0 0.0
    %1082 = vmatpush1.msra.mxu0 0.0
    %1083 = vmatprep.subr.mxu0 0.0
    %1084 = vmatpush1.msra.mxu0 0.0
    %1085 = vmatprep.mubr.f32.mxu0 0.0
    %1086 = vmatmul.mubr.f32.gmra.mrb[0].mxu0 %v1019
    %v1087 = vpop.f32.mrb[0].mxu0
    %v1088 = vadd.f32 %v1017, %v1087
    %v1089 = vpop.f32.mrb[0].mxu0
    %1090 = vdwg.mxu0
    %vm1091 = vcmask 130048
    %v1092 = vsel %vm1091, %v1088, -inf
    %1093 = vmax.xlane.f32.xlu0 %v1092
    %v1094 = vpop.xlane.xlu0 %1093
    %v1095 = vsub.f32 %v1088, %v1094
    %v1096 = vmul.f32 %v1095, 1.442695
    %v1097 = vpow.pop %v1096
    %v1098 = vsel %vm1091, %v1097, 0.0
    %1099 = vadd.xlane.f32.xlu0 %v1098
    %v1100 = vpop.xlane.xlu0 %1099
    %v1101 = vlog2.pop %v1100
    %v1102 = vmul.f32 %v1101, 0.6931472
    %v1103 = vadd.f32 %v1094, %v1102
    %v1104 = vsub.f32 %v1088, %v1103
    %1105 = vst.msk [vmem:[#allocation3] sm:$0xff] %vm1091, %v1104
    // Predicated region
    $region18: #{tpu_custom_call.1} parent=1 // pred_check
      _
    $region19: #{tpu_custom_call.1} parent=1 // pred_check_branch
      %1107 = sbr.rel (0) target = $region21
    $region20: #{tpu_custom_call.1} parent=1 // pred_region
      %s1109 = ssub.s32 128, 128
      %1110 = vsyncadd [#allocation4], %s1109
      %s1112 = sshll.u32 [#allocation3], 4
      %s1113 = int_to_ptr.vmem [resolvable:$true] %s1112
      %1115 = dma.vmem_to_hbm [thread:$0]  %s1113, 128, %s4, [#allocation4]
    $region21: #{tpu_custom_call.1} parent=1 // pred_fallthru
      _
    // Predicated region
    $region22: #{tpu_custom_call.1} parent=1 // pred_check
      _
    $region23: #{tpu_custom_call.1} parent=1 // pred_check_branch
      %1117 = sbr.rel (0) target = $region25
    $region24: #{tpu_custom_call.1} parent=1 // pred_region
      %1118 = dma.done [#allocation4], 128
    $region25: #{tpu_custom_call.1} parent=1 // pred_fallthru
      _
    %1119 = vsyncpa [#allocation4], 1

</llo_original>
